<compile_context>
chip_gen: v5e
topology: v5e:2x2
jax: 0.10.0
libtpu: 0.0.40
codegen_flags: <defaults>
</compile_context>

<pallas_src>
import functools

import jax
import jax.numpy as jnp
from jax.experimental import pallas as pl
from jax.experimental.pallas import tpu as pltpu


# ------------------------------- fused kernel ------------------------------- #

def group_kernel(x_ref, w_in2_ref, w_lr_ref, w_out_ref, pc_lr_ref, pc_o_ref,
                 o_ref, *, num_blocks, kd1, is_causal, eps, mxu_dtype):
    d_feat, T = x_ref.shape
    cd1 = w_out_ref.shape[2]
    two_c = 2 * cd1

    x = x_ref[...].astype(jnp.float32)                        # (d_feat, T)
    # Hoisted loop-invariants: lane-index iota for shift masks, ones column for the
    # MXU-based per-channel reductions.
    col = jax.lax.broadcasted_iota(jnp.int32, (two_c, T), 1)
    ones_col = jnp.ones((T, 1), jnp.float32)
    inv_T = 1.0 / T

    def prelu(v, a):                                          # a: (c, 1)
        return jnp.where(v > 0, v, a * v)

    def inorm(v, gamma, beta):
        # InstanceNorm1d, single-pass stats (var = E[x^2] - E[x]^2, biased).
        # Per-channel sum and sum-of-squares via ONE MXU matmul (f32 operands so the
        # statistics stay full precision); keeps the XLU free for the rolls.
        c = v.shape[0]
        s = jnp.dot(jnp.concatenate([v, v * v], axis=0), ones_col,
                    preferred_element_type=jnp.float32)       # (2c, 1)
        mean = s[:c] * inv_T
        var = jnp.maximum(s[c:] * inv_T - mean * mean, 0.0)
        scale = jax.lax.rsqrt(var + eps) * gamma
        return v * scale + (beta - mean * scale)

    def shift(u, s):
        # shift(u, s)[:, t] = u[:, t - s], zero outside [0, T)  (ConstantPad1d + tap)
        if s == 0:
            return u
        r = pltpu.roll(u, shift=s % T, axis=1)                # XLU lane rotate
        if s > 0:
            return jnp.where(col >= s, r, 0.0)
        return jnp.where(col < T + s, r, 0.0)

    def mm(w, v):
        return jnp.dot(w.astype(mxu_dtype), v.astype(mxu_dtype),
                       preferred_element_type=jnp.float32)

    for p in range(num_blocks):                               # static unroll, P small
        dil = 2 ** p
        pad_l = (kd1 - 1) * dil if is_causal else ((kd1 - 1) * dil) // 2
        shifts = [pad_l - k * dil for k in range(kd1)]

        pc_lr = pc_lr_ref[p].astype(jnp.float32)              # (2*cd1, 3) [a, g, b]
        pc_o = pc_o_ref[p].astype(jnp.float32)                # (cd1, 3)   [a, g, b]

        # in_conv with pre-stacked weights -> [h; h] stacked for both branches.
        u = mm(w_in2_ref[p], x)                               # (2*cd1, T)

        # fused left+right branch: one PReLU, one IN, kd1 rolls, one matmul.
        u = inorm(prelu(u, pc_lr[:, 0:1]), pc_lr[:, 1:2], pc_lr[:, 2:3])
        su = jnp.concatenate([shift(u, s) for s in shifts], axis=0)  # (kd1*2*cd1, T)
        lr = mm(w_lr_ref[p], su)                              # (2*cd1, T)
        g = lr[:cd1] * jax.nn.sigmoid(lr[cd1:])               # gated product (cd1, T)

        # out_conv: PReLU -> IN -> 1x1 conv, then residual.
        v = inorm(prelu(g, pc_o[:, 0:1]), pc_o[:, 1:2], pc_o[:, 2:3])
        x = x + mm(w_out_ref[p], v)                           # (d_feat, T)

    o_ref[...] = x.astype(o_ref.dtype)


# ------------------------------ pallas wrapper ------------------------------ #

def squeezed_tcn_group(x, params_list, *, kd1, is_causal, eps=1e-5,
                       mxu_dtype=jnp.bfloat16):
    B, d_feat, T = x.shape
    P = len(params_list)
    cd1 = params_list[0]["w_in"].shape[0]

    def fused_dconv(w_l, w_r):
        # (kd1, cd1, cd1) x2 -> (2*cd1, kd1*2*cd1): per-tap block-diag [w_l[k], w_r[k]]
        # laid out tap-major along columns (matches the stacked/shifted activations).
        z = jnp.zeros((cd1, cd1), w_l.dtype)
        taps = [jnp.block([[w_l[k], z], [z, w_r[k]]]) for k in range(kd1)]
        return jnp.concatenate(taps, axis=1)

    w_in2_all = jnp.stack(
        [jnp.concatenate([p["w_in"], p["w_in"]], axis=0) for p in params_list]
    ).astype(mxu_dtype)                                       # (P, 2*cd1, d_feat)
    w_lr_all = jnp.stack(
        [fused_dconv(p["w_l"], p["w_r"]) for p in params_list]
    ).astype(mxu_dtype)                                       # (P, 2*cd1, kd1*2*cd1)
    w_out_all = jnp.stack([p["w_out"] for p in params_list]).astype(mxu_dtype)

    # Per-channel PReLU/IN params, stacked [left; right] for the fused branch and
    # packed [a, g, b] along the lane axis (kept f32).
    pc_lr_all = jnp.stack([
        jnp.concatenate(
            [jnp.concatenate([p["a_l"], p["a_r"]], axis=0),
             jnp.concatenate([p["g_l"], p["g_r"]], axis=0),
             jnp.concatenate([p["b_l"], p["b_r"]], axis=0)], axis=1)
        for p in params_list])                                # (P, 2*cd1, 3)
    pc_o_all = jnp.stack([
        jnp.concatenate([p["a_o"], p["g_o"], p["b_o"]], axis=1)
        for p in params_list])                                # (P, cd1, 3)

    kernel = functools.partial(group_kernel, num_blocks=P, kd1=kd1,
                               is_causal=is_causal, eps=eps, mxu_dtype=mxu_dtype)

    def whole(shape):
        n = len(shape)
        return pl.BlockSpec(shape, lambda b, _n=n: (0,) * _n)

    return pl.pallas_call(
        kernel,
        out_shape=jax.ShapeDtypeStruct((B, d_feat, T), x.dtype),
        grid_spec=pltpu.PrefetchScalarGridSpec(
            num_scalar_prefetch=0,
            grid=(B,),
            in_specs=[
                pl.BlockSpec((None, d_feat, T), lambda b: (b, 0, 0)),  # x (batch squeezed)
                whole(w_in2_all.shape),
                whole(w_lr_all.shape),
                whole(w_out_all.shape),
                whole(pc_lr_all.shape),
                whole(pc_o_all.shape),
            ],
            out_specs=pl.BlockSpec((None, d_feat, T), lambda b: (b, 0, 0)),
        ),
        compiler_params=pltpu.CompilerParams(
            dimension_semantics=("parallel",)),               # B=2 -> 2 TCs on v7x
    )(x, w_in2_all, w_lr_all, w_out_all, pc_lr_all, pc_o_all)


# -------------------------------- parameters -------------------------------- #

def init_tcm_params(key, d_feat, cd1, kd1):
    ks = jax.random.split(key, 4)

    def conv_w(k, shape, fan_in):
        bound = 1.0 / float(fan_in) ** 0.5
        return jax.random.uniform(k, shape, jnp.float32, -bound, bound)

    ones = jnp.ones((cd1, 1), jnp.float32)
    zeros = jnp.zeros((cd1, 1), jnp.float32)
    prelu = jnp.full((cd1, 1), 0.25, jnp.float32)
    return dict(
        w_in=conv_w(ks[0], (cd1, d_feat), d_feat),            # Conv1d(d_feat, cd1, 1)
        w_l=conv_w(ks[1], (kd1, cd1, cd1), cd1 * kd1),        # Conv1d(cd1, cd1, kd1) as (k, out, in)
        w_r=conv_w(ks[2], (kd1, cd1, cd1), cd1 * kd1),
        w_out=conv_w(ks[3], (d_feat, cd1), cd1),              # Conv1d(cd1, d_feat, 1)
        a_l=prelu, g_l=ones, b_l=zeros,
        a_r=prelu, g_r=ones, b_r=zeros,
        a_o=prelu, g_o=ones, b_o=zeros,
    )


# ---------------------------- plain-JAX reference ---------------------------- #

def tcm_ref(x, p, *, kd1, dilation, is_causal, eps=1e-5):
    pad_l = (kd1 - 1) * dilation if is_causal else (kd1 - 1) * dilation // 2
    pad_r = 0 if is_causal else (kd1 - 1) * dilation // 2

    def per_sample(xb):
        T = xb.shape[1]
        h = p["w_in"] @ xb

        def branch(a, g, b, w):
            u = jnp.where(h > 0, h, a * h)
            m = u.mean(1, keepdims=True)
            v = ((u - m) ** 2).mean(1, keepdims=True)
            u = (u - m) / jnp.sqrt(v + eps) * g + b
            u_pad = jnp.pad(u, ((0, 0), (pad_l, pad_r)))
            return sum(w[k] @ u_pad[:, k * dilation:k * dilation + T]
                       for k in range(kd1))

        left = branch(p["a_l"], p["g_l"], p["b_l"], p["w_l"])
        right = jax.nn.sigmoid(branch(p["a_r"], p["g_r"], p["b_r"], p["w_r"]))
        gt = left * right
        u = jnp.where(gt > 0, gt, p["a_o"] * gt)
        m = u.mean(1, keepdims=True)
        v = ((u - m) ** 2).mean(1, keepdims=True)
        u = (u - m) / jnp.sqrt(v + eps) * p["g_o"] + p["b_o"]
        return xb + p["w_out"] @ u

    return jax.vmap(per_sample)(x)


def group_ref(x, params_list, *, kd1, is_causal):
    for i, p in enumerate(params_list):
        x = tcm_ref(x, p, kd1=kd1, dilation=2 ** i, is_causal=is_causal)
    return x


# ----------------------------------- main ------------------------------------ #

if __name__ == "__main__":
    # SqueezedTCNGroup(kd1=3, cd1=16, d_feat=32, p=2, is_causal=True, norm_type='IN')
    kd1, cd1, d_feat, P = 3, 16, 32, 2
    B, T = 2, 128

    key = jax.random.PRNGKey(0)
    kx, *kparams = jax.random.split(key, 1 + P)
    x = jax.random.normal(kx, (B, d_feat, T), jnp.float32)
    params_list = [init_tcm_params(kparams[i], d_feat, cd1, kd1) for i in range(P)]

    ref = jax.block_until_ready(group_ref(x, params_list, kd1=kd1, is_causal=True))
    ref_nc = jax.block_until_ready(group_ref(x, params_list, kd1=kd1, is_causal=False))

    # f32 MXU operands — matches the plain-JAX reference tightly (causal + non-causal)
    out = jax.block_until_ready(
        squeezed_tcn_group(x, params_list, kd1=kd1, is_causal=True,
                           mxu_dtype=jnp.float32))
    assert out.shape == (B, d_feat, T)
    assert jnp.allclose(out, ref, atol=1e-3, rtol=1e-3), (
        float(jnp.max(jnp.abs(out - ref))))

    out_nc = jax.block_until_ready(
        squeezed_tcn_group(x, params_list, kd1=kd1, is_causal=False,
                           mxu_dtype=jnp.float32))
    assert jnp.allclose(out_nc, ref_nc, atol=1e-3, rtol=1e-3), (
        float(jnp.max(jnp.abs(out_nc - ref_nc))))

    # default path: bf16 MXU operands, f32 accumulation + f32 elementwise/IN stats
    out_bf = jax.block_until_ready(
        squeezed_tcn_group(x, params_list, kd1=kd1, is_causal=True))
    assert float(jnp.max(jnp.abs(out_bf - ref))) < 0.25

    print("KERNEL_OK")
</pallas_src>

<mosaic_0001>
module attributes {stable_mosaic.version = 11 : i64} {
  func.func @group_kernel(%arg0: i32, %arg1: memref<1x32x128xf32, #tpu.memory_space<vmem>>, %arg2: memref<2x32x32xf32, #tpu.memory_space<vmem>>, %arg3: memref<2x32x96xf32, #tpu.memory_space<vmem>>, %arg4: memref<2x32x16xf32, #tpu.memory_space<vmem>>, %arg5: memref<2x32x3xf32, #tpu.memory_space<vmem>>, %arg6: memref<2x16x3xf32, #tpu.memory_space<vmem>>, %arg7: memref<1x32x128xf32, #tpu.memory_space<vmem>>) attributes {dimension_semantics = [#tpu.dimension_semantics<parallel>], iteration_bounds = array<i64: 2>, scalar_prefetch = 0 : i64, scratch_operands = 0 : i64, tpu.core_type = #tpu.core_type<tc>, window_params = [{transform_indices = @transform_0, window_bounds = array<i64: 1, 32, 128>}, {pipeline_mode = #tpu.pipeline_mode<synchronous>, transform_indices = @transform_1, window_bounds = array<i64: 2, 32, 32>}, {pipeline_mode = #tpu.pipeline_mode<synchronous>, transform_indices = @transform_2, window_bounds = array<i64: 2, 32, 96>}, {pipeline_mode = #tpu.pipeline_mode<synchronous>, transform_indices = @transform_3, window_bounds = array<i64: 2, 32, 16>}, {pipeline_mode = #tpu.pipeline_mode<synchronous>, transform_indices = @transform_4, window_bounds = array<i64: 2, 32, 3>}, {pipeline_mode = #tpu.pipeline_mode<synchronous>, transform_indices = @transform_5, window_bounds = array<i64: 2, 16, 3>}, {transform_indices = @transform_6, window_bounds = array<i64: 1, 32, 128>}]} {
    %c0 = arith.constant 0 : index
    %c0_0 = arith.constant 0 : index
    %c0_1 = arith.constant 0 : index
    %0 = vector.load %arg1[%c0, %c0_0, %c0_1] : memref<1x32x128xf32, #tpu.memory_space<vmem>>, vector<1x32x128xf32>
    %1 = vector.shape_cast %0 : vector<1x32x128xf32> to vector<32x128xf32>
    %2 = tpu.iota {dimensions = array<i32: 1>} : vector<32x128xi32>
    %cst = arith.constant 1.000000e+00 : f32
    %3 = vector.broadcast %cst : f32 to vector<128x1xf32>
    %c0_2 = arith.constant 0 : index
    %c0_3 = arith.constant 0 : index
    %c0_4 = arith.constant 0 : index
    %4 = vector.load %arg5[%c0_2, %c0_3, %c0_4] : memref<2x32x3xf32, #tpu.memory_space<vmem>>, vector<1x32x3xf32>
    %5 = vector.shape_cast %4 : vector<1x32x3xf32> to vector<32x3xf32>
    %c0_5 = arith.constant 0 : index
    %c0_6 = arith.constant 0 : index
    %c0_7 = arith.constant 0 : index
    %6 = vector.load %arg6[%c0_5, %c0_6, %c0_7] : memref<2x16x3xf32, #tpu.memory_space<vmem>>, vector<1x16x3xf32>
    %7 = vector.shape_cast %6 : vector<1x16x3xf32> to vector<16x3xf32>
    %c0_8 = arith.constant 0 : index
    %c0_9 = arith.constant 0 : index
    %c0_10 = arith.constant 0 : index
    %8 = vector.load %arg2[%c0_8, %c0_9, %c0_10] : memref<2x32x32xf32, #tpu.memory_space<vmem>>, vector<1x32x32xf32>
    %9 = vector.shape_cast %8 : vector<1x32x32xf32> to vector<32x32xf32>
    %cst_11 = arith.constant dense<0.000000e+00> : vector<32x128xf32>
    %10 = tpu.matmul %9, %1, %cst_11 {dimension_numbers = #tpu.dot_dimension_numbers<[1], [0], [0], [1], [0, 0, 1, 1], [], []>} : vector<32x32xf32>, vector<32x128xf32>, vector<32x128xf32> -> vector<32x128xf32>
    %11 = vector.extract_strided_slice %5 {offsets = [0, 0], sizes = [32, 1], strides = [1, 1]} : vector<32x3xf32> to vector<32x1xf32>
    %cst_12 = arith.constant 0.000000e+00 : f32
    %12 = vector.broadcast %cst_12 : f32 to vector<32x128xf32>
    %13 = arith.cmpf ogt, %10, %12 : vector<32x128xf32>
    %14 = vector.broadcast %11 : vector<32x1xf32> to vector<32x128xf32>
    %15 = arith.mulf %14, %10 : vector<32x128xf32>
    %16 = arith.select %13, %10, %15 : vector<32x128xi1>, vector<32x128xf32>
    %17 = vector.extract_strided_slice %5 {offsets = [0, 1], sizes = [32, 1], strides = [1, 1]} : vector<32x3xf32> to vector<32x1xf32>
    %18 = vector.extract_strided_slice %5 {offsets = [0, 2], sizes = [32, 1], strides = [1, 1]} : vector<32x3xf32> to vector<32x1xf32>
    %19 = arith.mulf %16, %16 : vector<32x128xf32>
    %20 = tpu.concatenate %16, %19 in 0 : vector<32x128xf32>, vector<32x128xf32> -> vector<64x128xf32>
    %cst_13 = arith.constant dense<0.000000e+00> : vector<64x1xf32>
    %21 = tpu.matmul %20, %3, %cst_13 {dimension_numbers = #tpu.dot_dimension_numbers<[1], [0], [0], [1], [0, 0, 1, 1], [], []>} : vector<64x128xf32>, vector<128x1xf32>, vector<64x1xf32> -> vector<64x1xf32>
    %22 = vector.extract_strided_slice %21 {offsets = [0, 0], sizes = [32, 1], strides = [1, 1]} : vector<64x1xf32> to vector<32x1xf32>
    %cst_14 = arith.constant 7.812500e-03 : f32
    %23 = vector.broadcast %cst_14 : f32 to vector<32x1xf32>
    %24 = arith.mulf %22, %23 : vector<32x1xf32>
    %25 = vector.extract_strided_slice %21 {offsets = [32, 0], sizes = [32, 1], strides = [1, 1]} : vector<64x1xf32> to vector<32x1xf32>
    %cst_15 = arith.constant 7.812500e-03 : f32
    %26 = vector.broadcast %cst_15 : f32 to vector<32x1xf32>
    %27 = arith.mulf %25, %26 : vector<32x1xf32>
    %28 = arith.mulf %24, %24 : vector<32x1xf32>
    %29 = arith.subf %27, %28 : vector<32x1xf32>
    %cst_16 = arith.constant 0.000000e+00 : f32
    %30 = vector.broadcast %cst_16 : f32 to vector<32x1xf32>
    %31 = arith.maximumf %29, %30 : vector<32x1xf32>
    %cst_17 = arith.constant 9.99999974E-6 : f32
    %32 = vector.broadcast %cst_17 : f32 to vector<32x1xf32>
    %33 = arith.addf %31, %32 : vector<32x1xf32>
    %34 = math.rsqrt %33 : vector<32x1xf32>
    %35 = arith.mulf %34, %17 : vector<32x1xf32>
    %36 = vector.broadcast %35 : vector<32x1xf32> to vector<32x128xf32>
    %37 = arith.mulf %16, %36 : vector<32x128xf32>
    %38 = arith.mulf %24, %35 : vector<32x1xf32>
    %39 = arith.subf %18, %38 : vector<32x1xf32>
    %40 = vector.broadcast %39 : vector<32x1xf32> to vector<32x128xf32>
    %41 = arith.addf %37, %40 : vector<32x128xf32>
    %c2_i32 = arith.constant 2 : i32
    %42 = tpu.dynamic_rotate %41 by %c2_i32 dim 1 : vector<32x128xf32>, i32 -> vector<32x128xf32>
    %c2_i32_18 = arith.constant 2 : i32
    %43 = vector.broadcast %c2_i32_18 : i32 to vector<32x128xi32>
    %44 = arith.cmpi sge, %2, %43 : vector<32x128xi32>
    %cst_19 = arith.constant 0.000000e+00 : f32
    %45 = vector.broadcast %cst_19 : f32 to vector<32x128xf32>
    %46 = arith.select %44, %42, %45 : vector<32x128xi1>, vector<32x128xf32>
    %c1_i32 = arith.constant 1 : i32
    %47 = tpu.dynamic_rotate %41 by %c1_i32 dim 1 : vector<32x128xf32>, i32 -> vector<32x128xf32>
    %c1_i32_20 = arith.constant 1 : i32
    %48 = vector.broadcast %c1_i32_20 : i32 to vector<32x128xi32>
    %49 = arith.cmpi sge, %2, %48 : vector<32x128xi32>
    %cst_21 = arith.constant 0.000000e+00 : f32
    %50 = vector.broadcast %cst_21 : f32 to vector<32x128xf32>
    %51 = arith.select %49, %47, %50 : vector<32x128xi1>, vector<32x128xf32>
    %52 = tpu.concatenate %46, %51, %41 in 0 : vector<32x128xf32>, vector<32x128xf32>, vector<32x128xf32> -> vector<96x128xf32>
    %c0_22 = arith.constant 0 : index
    %c0_23 = arith.constant 0 : index
    %c0_24 = arith.constant 0 : index
    %53 = vector.load %arg3[%c0_22, %c0_23, %c0_24] : memref<2x32x96xf32, #tpu.memory_space<vmem>>, vector<1x32x96xf32>
    %54 = vector.shape_cast %53 : vector<1x32x96xf32> to vector<32x96xf32>
    %cst_25 = arith.constant dense<0.000000e+00> : vector<32x128xf32>
    %55 = tpu.matmul %54, %52, %cst_25 {dimension_numbers = #tpu.dot_dimension_numbers<[1], [0], [0], [1], [0, 0, 1, 1], [], []>} : vector<32x96xf32>, vector<96x128xf32>, vector<32x128xf32> -> vector<32x128xf32>
    %56 = vector.extract_strided_slice %55 {offsets = [0, 0], sizes = [16, 128], strides = [1, 1]} : vector<32x128xf32> to vector<16x128xf32>
    %57 = vector.extract_strided_slice %55 {offsets = [16, 0], sizes = [16, 128], strides = [1, 1]} : vector<32x128xf32> to vector<16x128xf32>
    %58 = arith.negf %57 : vector<16x128xf32>
    %59 = math.exp %58 : vector<16x128xf32>
    %cst_26 = arith.constant 1.000000e+00 : f32
    %60 = vector.broadcast %cst_26 : f32 to vector<16x128xf32>
    %61 = arith.addf %60, %59 : vector<16x128xf32>
    %62 = arith.divf %60, %61 : vector<16x128xf32>
    %63 = arith.mulf %56, %62 : vector<16x128xf32>
    %64 = vector.extract_strided_slice %7 {offsets = [0, 0], sizes = [16, 1], strides = [1, 1]} : vector<16x3xf32> to vector<16x1xf32>
    %cst_27 = arith.constant 0.000000e+00 : f32
    %65 = vector.broadcast %cst_27 : f32 to vector<16x128xf32>
    %66 = arith.cmpf ogt, %63, %65 : vector<16x128xf32>
    %67 = vector.broadcast %64 : vector<16x1xf32> to vector<16x128xf32>
    %68 = arith.mulf %67, %63 : vector<16x128xf32>
    %69 = arith.select %66, %63, %68 : vector<16x128xi1>, vector<16x128xf32>
    %70 = vector.extract_strided_slice %7 {offsets = [0, 1], sizes = [16, 1], strides = [1, 1]} : vector<16x3xf32> to vector<16x1xf32>
    %71 = vector.extract_strided_slice %7 {offsets = [0, 2], sizes = [16, 1], strides = [1, 1]} : vector<16x3xf32> to vector<16x1xf32>
    %72 = arith.mulf %69, %69 : vector<16x128xf32>
    %73 = tpu.concatenate %69, %72 in 0 : vector<16x128xf32>, vector<16x128xf32> -> vector<32x128xf32>
    %cst_28 = arith.constant dense<0.000000e+00> : vector<32x1xf32>
    %74 = tpu.matmul %73, %3, %cst_28 {dimension_numbers = #tpu.dot_dimension_numbers<[1], [0], [0], [1], [0, 0, 1, 1], [], []>} : vector<32x128xf32>, vector<128x1xf32>, vector<32x1xf32> -> vector<32x1xf32>
    %75 = vector.extract_strided_slice %74 {offsets = [0, 0], sizes = [16, 1], strides = [1, 1]} : vector<32x1xf32> to vector<16x1xf32>
    %cst_29 = arith.constant 7.812500e-03 : f32
    %76 = vector.broadcast %cst_29 : f32 to vector<16x1xf32>
    %77 = arith.mulf %75, %76 : vector<16x1xf32>
    %78 = vector.extract_strided_slice %74 {offsets = [16, 0], sizes = [16, 1], strides = [1, 1]} : vector<32x1xf32> to vector<16x1xf32>
    %cst_30 = arith.constant 7.812500e-03 : f32
    %79 = vector.broadcast %cst_30 : f32 to vector<16x1xf32>
    %80 = arith.mulf %78, %79 : vector<16x1xf32>
    %81 = arith.mulf %77, %77 : vector<16x1xf32>
    %82 = arith.subf %80, %81 : vector<16x1xf32>
    %cst_31 = arith.constant 0.000000e+00 : f32
    %83 = vector.broadcast %cst_31 : f32 to vector<16x1xf32>
    %84 = arith.maximumf %82, %83 : vector<16x1xf32>
    %cst_32 = arith.constant 9.99999974E-6 : f32
    %85 = vector.broadcast %cst_32 : f32 to vector<16x1xf32>
    %86 = arith.addf %84, %85 : vector<16x1xf32>
    %87 = math.rsqrt %86 : vector<16x1xf32>
    %88 = arith.mulf %87, %70 : vector<16x1xf32>
    %89 = vector.broadcast %88 : vector<16x1xf32> to vector<16x128xf32>
    %90 = arith.mulf %69, %89 : vector<16x128xf32>
    %91 = arith.mulf %77, %88 : vector<16x1xf32>
    %92 = arith.subf %71, %91 : vector<16x1xf32>
    %93 = vector.broadcast %92 : vector<16x1xf32> to vector<16x128xf32>
    %94 = arith.addf %90, %93 : vector<16x128xf32>
    %c0_33 = arith.constant 0 : index
    %c0_34 = arith.constant 0 : index
    %c0_35 = arith.constant 0 : index
    %95 = vector.load %arg4[%c0_33, %c0_34, %c0_35] : memref<2x32x16xf32, #tpu.memory_space<vmem>>, vector<1x32x16xf32>
    %96 = vector.shape_cast %95 : vector<1x32x16xf32> to vector<32x16xf32>
    %cst_36 = arith.constant dense<0.000000e+00> : vector<32x128xf32>
    %97 = tpu.matmul %96, %94, %cst_36 {dimension_numbers = #tpu.dot_dimension_numbers<[1], [0], [0], [1], [0, 0, 1, 1], [], []>} : vector<32x16xf32>, vector<16x128xf32>, vector<32x128xf32> -> vector<32x128xf32>
    %98 = arith.addf %1, %97 : vector<32x128xf32>
    %c1 = arith.constant 1 : index
    %c0_37 = arith.constant 0 : index
    %c0_38 = arith.constant 0 : index
    %99 = vector.load %arg5[%c1, %c0_37, %c0_38] : memref<2x32x3xf32, #tpu.memory_space<vmem>>, vector<1x32x3xf32>
    %100 = vector.shape_cast %99 : vector<1x32x3xf32> to vector<32x3xf32>
    %c1_39 = arith.constant 1 : index
    %c0_40 = arith.constant 0 : index
    %c0_41 = arith.constant 0 : index
    %101 = vector.load %arg6[%c1_39, %c0_40, %c0_41] : memref<2x16x3xf32, #tpu.memory_space<vmem>>, vector<1x16x3xf32>
    %102 = vector.shape_cast %101 : vector<1x16x3xf32> to vector<16x3xf32>
    %c1_42 = arith.constant 1 : index
    %c0_43 = arith.constant 0 : index
    %c0_44 = arith.constant 0 : index
    %103 = vector.load %arg2[%c1_42, %c0_43, %c0_44] : memref<2x32x32xf32, #tpu.memory_space<vmem>>, vector<1x32x32xf32>
    %104 = vector.shape_cast %103 : vector<1x32x32xf32> to vector<32x32xf32>
    %cst_45 = arith.constant dense<0.000000e+00> : vector<32x128xf32>
    %105 = tpu.matmul %104, %98, %cst_45 {dimension_numbers = #tpu.dot_dimension_numbers<[1], [0], [0], [1], [0, 0, 1, 1], [], []>} : vector<32x32xf32>, vector<32x128xf32>, vector<32x128xf32> -> vector<32x128xf32>
    %106 = vector.extract_strided_slice %100 {offsets = [0, 0], sizes = [32, 1], strides = [1, 1]} : vector<32x3xf32> to vector<32x1xf32>
    %cst_46 = arith.constant 0.000000e+00 : f32
    %107 = vector.broadcast %cst_46 : f32 to vector<32x128xf32>
    %108 = arith.cmpf ogt, %105, %107 : vector<32x128xf32>
    %109 = vector.broadcast %106 : vector<32x1xf32> to vector<32x128xf32>
    %110 = arith.mulf %109, %105 : vector<32x128xf32>
    %111 = arith.select %108, %105, %110 : vector<32x128xi1>, vector<32x128xf32>
    %112 = vector.extract_strided_slice %100 {offsets = [0, 1], sizes = [32, 1], strides = [1, 1]} : vector<32x3xf32> to vector<32x1xf32>
    %113 = vector.extract_strided_slice %100 {offsets = [0, 2], sizes = [32, 1], strides = [1, 1]} : vector<32x3xf32> to vector<32x1xf32>
    %114 = arith.mulf %111, %111 : vector<32x128xf32>
    %115 = tpu.concatenate %111, %114 in 0 : vector<32x128xf32>, vector<32x128xf32> -> vector<64x128xf32>
    %cst_47 = arith.constant dense<0.000000e+00> : vector<64x1xf32>
    %116 = tpu.matmul %115, %3, %cst_47 {dimension_numbers = #tpu.dot_dimension_numbers<[1], [0], [0], [1], [0, 0, 1, 1], [], []>} : vector<64x128xf32>, vector<128x1xf32>, vector<64x1xf32> -> vector<64x1xf32>
    %117 = vector.extract_strided_slice %116 {offsets = [0, 0], sizes = [32, 1], strides = [1, 1]} : vector<64x1xf32> to vector<32x1xf32>
    %cst_48 = arith.constant 7.812500e-03 : f32
    %118 = vector.broadcast %cst_48 : f32 to vector<32x1xf32>
    %119 = arith.mulf %117, %118 : vector<32x1xf32>
    %120 = vector.extract_strided_slice %116 {offsets = [32, 0], sizes = [32, 1], strides = [1, 1]} : vector<64x1xf32> to vector<32x1xf32>
    %cst_49 = arith.constant 7.812500e-03 : f32
    %121 = vector.broadcast %cst_49 : f32 to vector<32x1xf32>
    %122 = arith.mulf %120, %121 : vector<32x1xf32>
    %123 = arith.mulf %119, %119 : vector<32x1xf32>
    %124 = arith.subf %122, %123 : vector<32x1xf32>
    %cst_50 = arith.constant 0.000000e+00 : f32
    %125 = vector.broadcast %cst_50 : f32 to vector<32x1xf32>
    %126 = arith.maximumf %124, %125 : vector<32x1xf32>
    %cst_51 = arith.constant 9.99999974E-6 : f32
    %127 = vector.broadcast %cst_51 : f32 to vector<32x1xf32>
    %128 = arith.addf %126, %127 : vector<32x1xf32>
    %129 = math.rsqrt %128 : vector<32x1xf32>
    %130 = arith.mulf %129, %112 : vector<32x1xf32>
    %131 = vector.broadcast %130 : vector<32x1xf32> to vector<32x128xf32>
    %132 = arith.mulf %111, %131 : vector<32x128xf32>
    %133 = arith.mulf %119, %130 : vector<32x1xf32>
    %134 = arith.subf %113, %133 : vector<32x1xf32>
    %135 = vector.broadcast %134 : vector<32x1xf32> to vector<32x128xf32>
    %136 = arith.addf %132, %135 : vector<32x128xf32>
    %c4_i32 = arith.constant 4 : i32
    %137 = tpu.dynamic_rotate %136 by %c4_i32 dim 1 : vector<32x128xf32>, i32 -> vector<32x128xf32>
    %c4_i32_52 = arith.constant 4 : i32
    %138 = vector.broadcast %c4_i32_52 : i32 to vector<32x128xi32>
    %139 = arith.cmpi sge, %2, %138 : vector<32x128xi32>
    %cst_53 = arith.constant 0.000000e+00 : f32
    %140 = vector.broadcast %cst_53 : f32 to vector<32x128xf32>
    %141 = arith.select %139, %137, %140 : vector<32x128xi1>, vector<32x128xf32>
    %c2_i32_54 = arith.constant 2 : i32
    %142 = tpu.dynamic_rotate %136 by %c2_i32_54 dim 1 : vector<32x128xf32>, i32 -> vector<32x128xf32>
    %c2_i32_55 = arith.constant 2 : i32
    %143 = vector.broadcast %c2_i32_55 : i32 to vector<32x128xi32>
    %144 = arith.cmpi sge, %2, %143 : vector<32x128xi32>
    %cst_56 = arith.constant 0.000000e+00 : f32
    %145 = vector.broadcast %cst_56 : f32 to vector<32x128xf32>
    %146 = arith.select %144, %142, %145 : vector<32x128xi1>, vector<32x128xf32>
    %147 = tpu.concatenate %141, %146, %136 in 0 : vector<32x128xf32>, vector<32x128xf32>, vector<32x128xf32> -> vector<96x128xf32>
    %c1_57 = arith.constant 1 : index
    %c0_58 = arith.constant 0 : index
    %c0_59 = arith.constant 0 : index
    %148 = vector.load %arg3[%c1_57, %c0_58, %c0_59] : memref<2x32x96xf32, #tpu.memory_space<vmem>>, vector<1x32x96xf32>
    %149 = vector.shape_cast %148 : vector<1x32x96xf32> to vector<32x96xf32>
    %cst_60 = arith.constant dense<0.000000e+00> : vector<32x128xf32>
    %150 = tpu.matmul %149, %147, %cst_60 {dimension_numbers = #tpu.dot_dimension_numbers<[1], [0], [0], [1], [0, 0, 1, 1], [], []>} : vector<32x96xf32>, vector<96x128xf32>, vector<32x128xf32> -> vector<32x128xf32>
    %151 = vector.extract_strided_slice %150 {offsets = [0, 0], sizes = [16, 128], strides = [1, 1]} : vector<32x128xf32> to vector<16x128xf32>
    %152 = vector.extract_strided_slice %150 {offsets = [16, 0], sizes = [16, 128], strides = [1, 1]} : vector<32x128xf32> to vector<16x128xf32>
    %153 = arith.negf %152 : vector<16x128xf32>
    %154 = math.exp %153 : vector<16x128xf32>
    %cst_61 = arith.constant 1.000000e+00 : f32
    %155 = vector.broadcast %cst_61 : f32 to vector<16x128xf32>
    %156 = arith.addf %155, %154 : vector<16x128xf32>
    %157 = arith.divf %155, %156 : vector<16x128xf32>
    %158 = arith.mulf %151, %157 : vector<16x128xf32>
    %159 = vector.extract_strided_slice %102 {offsets = [0, 0], sizes = [16, 1], strides = [1, 1]} : vector<16x3xf32> to vector<16x1xf32>
    %cst_62 = arith.constant 0.000000e+00 : f32
    %160 = vector.broadcast %cst_62 : f32 to vector<16x128xf32>
    %161 = arith.cmpf ogt, %158, %160 : vector<16x128xf32>
    %162 = vector.broadcast %159 : vector<16x1xf32> to vector<16x128xf32>
    %163 = arith.mulf %162, %158 : vector<16x128xf32>
    %164 = arith.select %161, %158, %163 : vector<16x128xi1>, vector<16x128xf32>
    %165 = vector.extract_strided_slice %102 {offsets = [0, 1], sizes = [16, 1], strides = [1, 1]} : vector<16x3xf32> to vector<16x1xf32>
    %166 = vector.extract_strided_slice %102 {offsets = [0, 2], sizes = [16, 1], strides = [1, 1]} : vector<16x3xf32> to vector<16x1xf32>
    %167 = arith.mulf %164, %164 : vector<16x128xf32>
    %168 = tpu.concatenate %164, %167 in 0 : vector<16x128xf32>, vector<16x128xf32> -> vector<32x128xf32>
    %cst_63 = arith.constant dense<0.000000e+00> : vector<32x1xf32>
    %169 = tpu.matmul %168, %3, %cst_63 {dimension_numbers = #tpu.dot_dimension_numbers<[1], [0], [0], [1], [0, 0, 1, 1], [], []>} : vector<32x128xf32>, vector<128x1xf32>, vector<32x1xf32> -> vector<32x1xf32>
    %170 = vector.extract_strided_slice %169 {offsets = [0, 0], sizes = [16, 1], strides = [1, 1]} : vector<32x1xf32> to vector<16x1xf32>
    %cst_64 = arith.constant 7.812500e-03 : f32
    %171 = vector.broadcast %cst_64 : f32 to vector<16x1xf32>
    %172 = arith.mulf %170, %171 : vector<16x1xf32>
    %173 = vector.extract_strided_slice %169 {offsets = [16, 0], sizes = [16, 1], strides = [1, 1]} : vector<32x1xf32> to vector<16x1xf32>
    %cst_65 = arith.constant 7.812500e-03 : f32
    %174 = vector.broadcast %cst_65 : f32 to vector<16x1xf32>
    %175 = arith.mulf %173, %174 : vector<16x1xf32>
    %176 = arith.mulf %172, %172 : vector<16x1xf32>
    %177 = arith.subf %175, %176 : vector<16x1xf32>
    %cst_66 = arith.constant 0.000000e+00 : f32
    %178 = vector.broadcast %cst_66 : f32 to vector<16x1xf32>
    %179 = arith.maximumf %177, %178 : vector<16x1xf32>
    %cst_67 = arith.constant 9.99999974E-6 : f32
    %180 = vector.broadcast %cst_67 : f32 to vector<16x1xf32>
    %181 = arith.addf %179, %180 : vector<16x1xf32>
    %182 = math.rsqrt %181 : vector<16x1xf32>
    %183 = arith.mulf %182, %165 : vector<16x1xf32>
    %184 = vector.broadcast %183 : vector<16x1xf32> to vector<16x128xf32>
    %185 = arith.mulf %164, %184 : vector<16x128xf32>
    %186 = arith.mulf %172, %183 : vector<16x1xf32>
    %187 = arith.subf %166, %186 : vector<16x1xf32>
    %188 = vector.broadcast %187 : vector<16x1xf32> to vector<16x128xf32>
    %189 = arith.addf %185, %188 : vector<16x128xf32>
    %c1_68 = arith.constant 1 : index
    %c0_69 = arith.constant 0 : index
    %c0_70 = arith.constant 0 : index
    %190 = vector.load %arg4[%c1_68, %c0_69, %c0_70] : memref<2x32x16xf32, #tpu.memory_space<vmem>>, vector<1x32x16xf32>
    %191 = vector.shape_cast %190 : vector<1x32x16xf32> to vector<32x16xf32>
    %cst_71 = arith.constant dense<0.000000e+00> : vector<32x128xf32>
    %192 = tpu.matmul %191, %189, %cst_71 {dimension_numbers = #tpu.dot_dimension_numbers<[1], [0], [0], [1], [0, 0, 1, 1], [], []>} : vector<32x16xf32>, vector<16x128xf32>, vector<32x128xf32> -> vector<32x128xf32>
    %193 = arith.addf %98, %192 : vector<32x128xf32>
    %c0_72 = arith.constant 0 : index
    %c0_73 = arith.constant 0 : index
    %c0_74 = arith.constant 0 : index
    %194 = vector.load %arg7[%c0_72, %c0_73, %c0_74] : memref<1x32x128xf32, #tpu.memory_space<vmem>>, vector<1x32x128xf32>
    %195 = vector.shape_cast %194 : vector<1x32x128xf32> to vector<32x128xf32>
    %196 = vector.shape_cast %193 : vector<32x128xf32> to vector<1x32x128xf32>
    tpu.vector_store %arg7[%c0_72, %c0_73, %c0_74], %196 {strides = array<i32>} : memref<1x32x128xf32, #tpu.memory_space<vmem>>, vector<1x32x128xf32>,
    return
  }
  func.func @transform_0(%arg0: i32) -> (i32, i32, i32) {
    %c0_i32 = arith.constant 0 : i32
    %c0_i32_0 = arith.constant 0 : i32
    %c0_i32_1 = arith.constant 0 : i32
    return %arg0, %c0_i32, %c0_i32_0 : i32, i32, i32
  }
  func.func @transform_1(%arg0: i32) -> (i32, i32, i32) {
    %c0_i32 = arith.constant 0 : i32
    %c0_i32_0 = arith.constant 0 : i32
    %c0_i32_1 = arith.constant 0 : i32
    %c0_i32_2 = arith.constant 0 : i32
    return %c0_i32, %c0_i32_0, %c0_i32_1 : i32, i32, i32
  }
  func.func @transform_2(%arg0: i32) -> (i32, i32, i32) {
    %c0_i32 = arith.constant 0 : i32
    %c0_i32_0 = arith.constant 0 : i32
    %c0_i32_1 = arith.constant 0 : i32
    %c0_i32_2 = arith.constant 0 : i32
    return %c0_i32, %c0_i32_0, %c0_i32_1 : i32, i32, i32
  }
  func.func @transform_3(%arg0: i32) -> (i32, i32, i32) {
    %c0_i32 = arith.constant 0 : i32
    %c0_i32_0 = arith.constant 0 : i32
    %c0_i32_1 = arith.constant 0 : i32
    %c0_i32_2 = arith.constant 0 : i32
    return %c0_i32, %c0_i32_0, %c0_i32_1 : i32, i32, i32
  }
  func.func @transform_4(%arg0: i32) -> (i32, i32, i32) {
    %c0_i32 = arith.constant 0 : i32
    %c0_i32_0 = arith.constant 0 : i32
    %c0_i32_1 = arith.constant 0 : i32
    %c0_i32_2 = arith.constant 0 : i32
    return %c0_i32, %c0_i32_0, %c0_i32_1 : i32, i32, i32
  }
  func.func @transform_5(%arg0: i32) -> (i32, i32, i32) {
    %c0_i32 = arith.constant 0 : i32
    %c0_i32_0 = arith.constant 0 : i32
    %c0_i32_1 = arith.constant 0 : i32
    %c0_i32_2 = arith.constant 0 : i32
    return %c0_i32, %c0_i32_0, %c0_i32_1 : i32, i32, i32
  }
  func.func @transform_6(%arg0: i32) -> (i32, i32, i32) {
    %c0_i32 = arith.constant 0 : i32
    %c0_i32_0 = arith.constant 0 : i32
    %c0_i32_1 = arith.constant 0 : i32
    return %arg0, %c0_i32, %c0_i32_0 : i32, i32, i32
  }
}

</mosaic_0001>

<llo_original>
// kernel: tpu_custom_call.1
$region0: #{tpu_custom_call.1}
  #allocation0 [shape = 'u32[]', space=smem, size = 0x4, offset = 0x4, fixed_abs, tag = 'smem constant byte address 0x4 - core index']
  #allocation1 [shape = 'u32[72,128]{1,0:T(1,128)}', space=vmem, size = 0x9000, scoped, tag = 'internal scratch']
  %s0 = inlined_call_operand.vmem [shape: f32[2,32,128], index: 0, kind: input, shape index: {}]
  %s1 = inlined_call_operand.vmem [shape: f32[2,32,32], index: 1, kind: input, shape index: {}]
  %s2 = inlined_call_operand.hbm [shape: f32[2,32,96], index: 2, kind: input, shape index: {}]
  %s3 = inlined_call_operand.vmem [shape: f32[2,32,16], index: 3, kind: input, shape index: {}]
  %s4 = inlined_call_operand.vmem [shape: f32[2,32,3], index: 4, kind: input, shape index: {}]
  %s5 = inlined_call_operand.vmem [shape: f32[2,16,3], index: 5, kind: input, shape index: {}]
  %s6 = inlined_call_operand.hbm [shape: f32[2,32,128], index: 6, kind: output, shape index: {}]
  %s7 = sld [smem:[#allocation0]]
  $region61: #{tpu_custom_call.1} parent=0
    _
  %s9 = ssub.s32 1, %s7
  %s10 = scalar_select 0, %s9, %s7
  $region1: #{tpu_custom_call.1} parent=0
    #allocation2 [shape = 'u8[32768]{0}', space=vmem, size = 0x8000, scoped, tag = 'input window, operand 2, single buffered']
    #allocation3 [shape = 's32[2]{0}', space=sflag, size = 0x8, scoped, tag = 'scoped memory for tpu_custom_call.1']
    #allocation4 [shape = 's32[2]{0}', space=sflag, size = 0x8, scoped, tag = 'scoped memory for tpu_custom_call.1']
    #allocation5 [shape = 'u8[32768]{0}', space=vmem, size = 0x8000, scoped, tag = 'output window, operand 0']
    %11 = vsyncpa [#allocation3], 0
    %12 = vsyncpa [#allocation4], 0
    %s13 = scalar_lea.sflag [#allocation4], 1
    %14 = vsyncpa %s13, 0
    loop: start=0, step=1, limit=4
    $region2: #{tpu_custom_call.1} parent=1 // loop_pre_header
      _
    $region3: #{tpu_custom_call.1} parent=1 // loop_header
      %s16 = sphi 0, %s20
      %p17 = scmp.ge.s32.totalorder %s16, 4
      %s26 = sphi 0, %s28
      %s29 = sphi 0, %s26
      %s30 = sphi 0, %s29
      %s46 = sphi 0, %s30
      %s50 = sphi 0, %s50
      %s52 = sphi 0, %s50
      %s53 = sphi 0, %s52
      %s67 = sphi 0, %s53
      %s71 = sphi 0, %s71
      %s73 = sphi 0, %s71
      %s74 = sphi 0, %s73
      %s88 = sphi 0, %s74
      %s92 = sphi 0, %s92
      %s94 = sphi 0, %s92
      %s95 = sphi 0, %s94
      %s109 = sphi 0, %s95
      %s113 = sphi 0, %s113
      %s115 = sphi 0, %s113
      %s116 = sphi 0, %s115
      %s130 = sphi 0, %s116
      %s134 = sphi 0, %s134
      %s136 = sphi 0, %s134
      %s137 = sphi 0, %s136
      %s151 = sphi 0, %s137
      %s157 = sphi 0, %s159
      %s160 = sphi 0, %s157
      %s161 = sphi 0, %s160
      %s177 = sphi 0, %s161
    $region4: #{tpu_custom_call.1} parent=1 // loop_header_branch
      %19 = sbr.rel (%p17) target = $region8
    $region5: #{tpu_custom_call.1} parent=1 // loop_body
      %s21 = ssub.s32 %s16, 1
      %s22 = ssub.s32 %s16, 2
      %s23 = sadd.s32 %s16, 1
      %s24 = ssub.s32 %s16, %s23
      %p25 = scmp.eq.s32.totalorder %s24, 0
      %s27 = sadd.s32 %s26, 1
      %s28 = scalar_select %p25, %s26, %s27
      %p31 = pneg %p25
      %p32 = scmp.eq.s32.totalorder %s16, 1
      %p33 = por %p31, %p32
      %p34 = scmp.ne.s32.totalorder %s26, %s29
      %p35 = scmp.eq.s32.totalorder %s16, 0
      %p36 = por %p34, %p35
      %p37 = scmp.ne.s32.totalorder %s26, %s29
      %p38 = scmp.eq.s32.totalorder %s21, 1
      %p39 = por %p37, %p38
      %p40 = scmp.ne.s32.totalorder %s29, %s30
      %p41 = scmp.eq.s32.totalorder %s21, 0
      %p42 = por %p40, %p41
      %p43 = scmp.ne.s32.totalorder %s29, %s30
      %p44 = scmp.eq.s32.totalorder %s22, 1
      %p45 = por %p43, %p44
      %p47 = scmp.ne.s32.totalorder %s30, %s46
      %p48 = scmp.eq.s32.totalorder %s22, 0
      %p49 = por %p47, %p48
      %s51 = sadd.s32 %s50, 1
      %p54 = scmp.eq.s32.totalorder %s16, 1
      %p55 = scmp.ne.s32.totalorder %s50, %s52
      %p56 = scmp.eq.s32.totalorder %s16, 0
      %p57 = por %p55, %p56
      %p58 = scmp.ne.s32.totalorder %s50, %s52
      %p59 = scmp.eq.s32.totalorder %s21, 1
      %p60 = por %p58, %p59
      %p61 = scmp.ne.s32.totalorder %s52, %s53
      %p62 = scmp.eq.s32.totalorder %s21, 0
      %p63 = por %p61, %p62
      %p64 = scmp.ne.s32.totalorder %s52, %s53
      %p65 = scmp.eq.s32.totalorder %s22, 1
      %p66 = por %p64, %p65
      %p68 = scmp.ne.s32.totalorder %s53, %s67
      %p69 = scmp.eq.s32.totalorder %s22, 0
      %p70 = por %p68, %p69
      %s72 = sadd.s32 %s71, 1
      %p75 = scmp.eq.s32.totalorder %s16, 1
      %p76 = scmp.ne.s32.totalorder %s71, %s73
      %p77 = scmp.eq.s32.totalorder %s16, 0
      %p78 = por %p76, %p77
      %p79 = scmp.ne.s32.totalorder %s71, %s73
      %p80 = scmp.eq.s32.totalorder %s21, 1
      %p81 = por %p79, %p80
      %p82 = scmp.ne.s32.totalorder %s73, %s74
      %p83 = scmp.eq.s32.totalorder %s21, 0
      %p84 = por %p82, %p83
      %p85 = scmp.ne.s32.totalorder %s73, %s74
      %p86 = scmp.eq.s32.totalorder %s22, 1
      %p87 = por %p85, %p86
      %p89 = scmp.ne.s32.totalorder %s74, %s88
      %p90 = scmp.eq.s32.totalorder %s22, 0
      %p91 = por %p89, %p90
      %s93 = sadd.s32 %s92, 1
      %p96 = scmp.eq.s32.totalorder %s16, 1
      %p97 = scmp.ne.s32.totalorder %s92, %s94
      %p98 = scmp.eq.s32.totalorder %s16, 0
      %p99 = por %p97, %p98
      %p100 = scmp.ne.s32.totalorder %s92, %s94
      %p101 = scmp.eq.s32.totalorder %s21, 1
      %p102 = por %p100, %p101
      %p103 = scmp.ne.s32.totalorder %s94, %s95
      %p104 = scmp.eq.s32.totalorder %s21, 0
      %p105 = por %p103, %p104
      %p106 = scmp.ne.s32.totalorder %s94, %s95
      %p107 = scmp.eq.s32.totalorder %s22, 1
      %p108 = por %p106, %p107
      %p110 = scmp.ne.s32.totalorder %s95, %s109
      %p111 = scmp.eq.s32.totalorder %s22, 0
      %p112 = por %p110, %p111
      %s114 = sadd.s32 %s113, 1
      %p117 = scmp.eq.s32.totalorder %s16, 1
      %p118 = scmp.ne.s32.totalorder %s113, %s115
      %p119 = scmp.eq.s32.totalorder %s16, 0
      %p120 = por %p118, %p119
      %p121 = scmp.ne.s32.totalorder %s113, %s115
      %p122 = scmp.eq.s32.totalorder %s21, 1
      %p123 = por %p121, %p122
      %p124 = scmp.ne.s32.totalorder %s115, %s116
      %p125 = scmp.eq.s32.totalorder %s21, 0
      %p126 = por %p124, %p125
      %p127 = scmp.ne.s32.totalorder %s115, %s116
      %p128 = scmp.eq.s32.totalorder %s22, 1
      %p129 = por %p127, %p128
      %p131 = scmp.ne.s32.totalorder %s116, %s130
      %p132 = scmp.eq.s32.totalorder %s22, 0
      %p133 = por %p131, %p132
      %s135 = sadd.s32 %s134, 1
      %p138 = scmp.eq.s32.totalorder %s16, 1
      %p139 = scmp.ne.s32.totalorder %s134, %s136
      %p140 = scmp.eq.s32.totalorder %s16, 0
      %p141 = por %p139, %p140
      %p142 = scmp.ne.s32.totalorder %s134, %s136
      %p143 = scmp.eq.s32.totalorder %s21, 1
      %p144 = por %p142, %p143
      %p145 = scmp.ne.s32.totalorder %s136, %s137
      %p146 = scmp.eq.s32.totalorder %s21, 0
      %p147 = por %p145, %p146
      %p148 = scmp.ne.s32.totalorder %s136, %s137
      %p149 = scmp.eq.s32.totalorder %s22, 1
      %p150 = por %p148, %p149
      %p152 = scmp.ne.s32.totalorder %s137, %s151
      %p153 = scmp.eq.s32.totalorder %s22, 0
      %p154 = por %p152, %p153
      %s155 = ssub.s32 %s16, %s23
      %p156 = scmp.eq.s32.totalorder %s155, 0
      %s158 = sadd.s32 %s157, 1
      %s159 = scalar_select %p156, %s157, %s158
      %p162 = pneg %p156
      %p163 = scmp.eq.s32.totalorder %s16, 1
      %p164 = por %p162, %p163
      %p165 = scmp.ne.s32.totalorder %s157, %s160
      %p166 = scmp.eq.s32.totalorder %s16, 0
      %p167 = por %p165, %p166
      %p168 = scmp.ne.s32.totalorder %s157, %s160
      %p169 = scmp.eq.s32.totalorder %s21, 1
      %p170 = por %p168, %p169
      %p171 = scmp.ne.s32.totalorder %s160, %s161
      %p172 = scmp.eq.s32.totalorder %s21, 0
      %p173 = por %p171, %p172
      %p174 = scmp.ne.s32.totalorder %s160, %s161
      %p175 = scmp.eq.s32.totalorder %s22, 1
      %p176 = por %p174, %p175
      %p178 = scmp.ne.s32.totalorder %s161, %s177
      %p179 = scmp.eq.s32.totalorder %s22, 0
      %p180 = por %p178, %p179
      %p181 = scmp.le.s32.totalorder 1, %s16
      %p182 = scmp.lt.s32.totalorder %s16, 3
      %p183 = pnand %p181, %p182
      %p184 = pneg %p183
      // Predicated region
      $region9: #{tpu_custom_call.1} parent=5 // pred_check
        _
      $region10: #{tpu_custom_call.1} parent=5 // pred_check_branch
        %186 = sbr.rel (%p183) target = $region12
      $region11: #{tpu_custom_call.1} parent=5 // pred_region
        %s187 = ssub.s32 %s16, 1
        // Predicated region
        $region13: #{tpu_custom_call.1} parent=11 // pred_check
          %p188 = pneg %p63
        $region14: #{tpu_custom_call.1} parent=11 // pred_check_branch
          %190 = sbr.rel (%p188) target = $region16
        $region15: #{tpu_custom_call.1} parent=11 // pred_region
          _
        $region16: #{tpu_custom_call.1} parent=11 // pred_fallthru
          _
        // Predicated region
        $region17: #{tpu_custom_call.1} parent=11 // pred_check
          %p191 = pneg %p84
        $region18: #{tpu_custom_call.1} parent=11 // pred_check_branch
          %193 = sbr.rel (%p191) target = $region20
        $region19: #{tpu_custom_call.1} parent=11 // pred_region
          %195 = vsyncadd [#allocation3], 0
          %s196 = sshll.u32 %s2, 4
          %s197 = int_to_ptr.hbm [resolvable:$true] %s196
          %s198 = sshll.u32 [#allocation2], 4
          %s199 = int_to_ptr.vmem [resolvable:$true] %s198
          %204 = dma.hbm_to_vmem [thread:$0]  %s197, 1024, %s199, [#allocation3], 128, 128, 8
        $region20: #{tpu_custom_call.1} parent=11 // pred_fallthru
          _
        // Predicated region
        $region21: #{tpu_custom_call.1} parent=11 // pred_check
          %p205 = pneg %p105
        $region22: #{tpu_custom_call.1} parent=11 // pred_check_branch
          %207 = sbr.rel (%p205) target = $region24
        $region23: #{tpu_custom_call.1} parent=11 // pred_region
          _
        $region24: #{tpu_custom_call.1} parent=11 // pred_fallthru
          _
        // Predicated region
        $region25: #{tpu_custom_call.1} parent=11 // pred_check
          %p208 = pneg %p126
        $region26: #{tpu_custom_call.1} parent=11 // pred_check_branch
          %210 = sbr.rel (%p208) target = $region28
        $region27: #{tpu_custom_call.1} parent=11 // pred_region
          _
        $region28: #{tpu_custom_call.1} parent=11 // pred_fallthru
          _
        // Predicated region
        $region29: #{tpu_custom_call.1} parent=11 // pred_check
          %p211 = pneg %p147
        $region30: #{tpu_custom_call.1} parent=11 // pred_check_branch
          %213 = sbr.rel (%p211) target = $region32
        $region31: #{tpu_custom_call.1} parent=11 // pred_region
          _
        $region32: #{tpu_custom_call.1} parent=11 // pred_fallthru
          _
      $region12: #{tpu_custom_call.1} parent=5 // pred_fallthru
        _
      %p214 = scmp.lt.s32.totalorder %s16, 2
      // Predicated region
      $region33: #{tpu_custom_call.1} parent=5 // pred_check
        %p215 = pneg %p214
      $region34: #{tpu_custom_call.1} parent=5 // pred_check_branch
        %217 = sbr.rel (%p215) target = $region36
      $region35: #{tpu_custom_call.1} parent=5 // pred_region
        // Predicated region
        $region37: #{tpu_custom_call.1} parent=35 // pred_check
          %p218 = pneg %p36
        $region38: #{tpu_custom_call.1} parent=35 // pred_check_branch
          %220 = sbr.rel (%p218) target = $region40
        $region39: #{tpu_custom_call.1} parent=35 // pred_region
          %p221 = scmp.lt.s32.totalorder %s16, 1
          %s222 = scalar_select %p221, %s16, 1
          %s223 = smul.addr %s222, 4
          %s224 = smul.addr %s223, 8
          %s225 = scalar_lea.vmem %s0, %s224
        $region40: #{tpu_custom_call.1} parent=35 // pred_fallthru
          _
      $region36: #{tpu_custom_call.1} parent=5 // pred_fallthru
        _
      %p226 = scmp.le.s32.totalorder 1, %s16
      %p227 = scmp.lt.s32.totalorder %s16, 3
      %p228 = pnand %p226, %p227
      %p229 = pneg %p228
      // Predicated region
      $region41: #{tpu_custom_call.1} parent=5 // pred_check
        _
      $region42: #{tpu_custom_call.1} parent=5 // pred_check_branch
        %231 = sbr.rel (%p228) target = $region44
      $region43: #{tpu_custom_call.1} parent=5 // pred_region
        %s232 = ssub.s32 %s16, 1
        // Predicated region
        $region45: #{tpu_custom_call.1} parent=43 // pred_check
          %p233 = pneg %p84
        $region46: #{tpu_custom_call.1} parent=43 // pred_check_branch
          %235 = sbr.rel (%p233) target = $region48
        $region47: #{tpu_custom_call.1} parent=43 // pred_region
          %237 = dma.done [#allocation3], 1024
        $region48: #{tpu_custom_call.1} parent=43 // pred_fallthru
          _
        %p238 = scmp.lt.s32.totalorder %s21, 1
        %s239 = scalar_select %p238, %s21, 1
        %s240 = smul.addr %s239, 4
        %s241 = smul.addr %s240, 8
        %s242 = scalar_lea.vmem %s0, %s241
        %p243 = pneg %p42
        %p244 = pneg %p39
        %p245 = pneg %p63
        %p246 = pneg %p60
        %p247 = pneg %p84
        %p248 = pneg %p81
        %p249 = pneg %p105
        %p250 = pneg %p102
        %p251 = pneg %p126
        %p252 = pneg %p123
        %p253 = pneg %p147
        %p254 = pneg %p144
        %p255 = pneg %p173
        %p256 = pneg %p170
        %s257 = sand.u32 %s160, 1
        %s258 = scalar_lea.sflag [#allocation4], %s257
        %s259 = sand.u32 %s160, 1
        %s260 = smul.addr %s259, 32
        %s261 = scalar_lea.vmem [#allocation5], %s260
        %p262 = scmp.lt.s32.totalorder %s21, 1
        %s263 = scalar_select %p262, %s21, 1
        %s264 = smul.addr %s263, 4
        %s265 = smul.addr %s264, 8
        %s266 = scalar_lea.vmem %s0, %s265
        %v267 = vld [vmem:[%s266] sm:$0xff]
        %v268 = vld [vmem:[%s266 + $0x8] sm:$0xff]
        %v269 = vld [vmem:[%s266 + $0x10] sm:$0xff]
        %v270 = vld [vmem:[%s266 + $0x18] sm:$0xff]
        %v271 = vlaneseq
        %v272 = vand.u32 %v271, 127
        %v273 = vld [vmem:[%s4] sm:$0xff]
        %v274 = vld [vmem:[%s4 + $0x8] sm:$0xff]
        %v275 = vld [vmem:[%s4 + $0x10] sm:$0xff]
        %v276 = vld [vmem:[%s4 + $0x18] sm:$0xff]
        %v277 = vld [vmem:[%s5] sm:$0xff]
        %v278 = vld [vmem:[%s5 + $0x8] sm:$0xff]
        %v279 = vld [vmem:[%s1] sm:$0xff]
        %v280 = vld [vmem:[%s1 + $0x8] sm:$0xff]
        %v281 = vld [vmem:[%s1 + $0x10] sm:$0xff]
        %v282 = vld [vmem:[%s1 + $0x18] sm:$0xff]
        %vm283 = vcmask 261120
        %v285 = vsel %vm283, %v279, 0
        %v288 = vsel %vm283, %v280, 0
        %v291 = vsel %vm283, %v281, 0
        %v294 = vsel %vm283, %v282, 0
        %296 = vmatpush.msra.mxu0 0.0
        %297 = vmatpush.msra.mxu0 0.0
        %298 = vmatpush.msra.mxu0 0.0
        %299 = vmatpush.msra.mxu0 0.0
        %300 = vmatpush.msra.mxu0 0.0
        %301 = vmatpush.msra.mxu0 0.0
        %302 = vmatpush.msra.mxu0 0.0
        %303 = vmatpush.msra.mxu0 0.0
        %304 = vmatpush.msra.mxu0 0.0
        %305 = vmatpush.msra.mxu0 0.0
        %306 = vmatpush.msra.mxu0 0.0
        %307 = vmatpush.msra.mxu0 0.0
        %308 = vmatpush.msra.mxu0 %v270
        %309 = vmatpush.msra.mxu0 %v269
        %310 = vmatpush.msra.mxu0 %v268
        %311 = vmatpush.msra.mxu0 %v267
        %312 = vmatmul.f32.gmra.mxu0 %v285
        %v313 = vpop.f32.mrf.mxu0
        %v314 = vadd.f32 0.0, %v313
        %315 = vmatmul.f32.gmra.mxu0 %v288
        %v316 = vpop.f32.mrf.mxu0
        %v317 = vadd.f32 0.0, %v316
        %318 = vmatmul.f32.gmra.mxu0 %v291
        %v319 = vpop.f32.mrf.mxu0
        %v320 = vadd.f32 0.0, %v319
        %321 = vmatmul.f32.gmra.mxu0 %v294
        %v322 = vpop.f32.mrf.mxu0
        %v323 = vadd.f32 0.0, %v322
        %324 = vdwg.mxu0
        %vm325 = vcmp.gt.f32.partialorder %v314, 0.0
        %vm326 = vcmp.gt.f32.partialorder %v317, 0.0
        %vm327 = vcmp.gt.f32.partialorder %v320, 0.0
        %vm328 = vcmp.gt.f32.partialorder %v323, 0.0
        %330 = vset.pattern.permute.xlu0 0
        %331 = vperm.xlu0 %330, %v273
        %v332 = vpop.permute.xlu0 %331
        %335 = vset.pattern.permute.xlu0 0
        %336 = vperm.xlu0 %335, %v274
        %v337 = vpop.permute.xlu0 %336
        %340 = vset.pattern.permute.xlu0 0
        %341 = vperm.xlu0 %340, %v275
        %v342 = vpop.permute.xlu0 %341
        %345 = vset.pattern.permute.xlu0 0
        %346 = vperm.xlu0 %345, %v276
        %v347 = vpop.permute.xlu0 %346
        %v349 = vmul.f32 %v332, %v314
        %v350 = vmul.f32 %v337, %v317
        %v351 = vmul.f32 %v342, %v320
        %v352 = vmul.f32 %v347, %v323
        %v353 = vsel %vm325, %v314, %v349
        %v354 = vsel %vm326, %v317, %v350
        %v355 = vsel %vm327, %v320, %v351
        %v356 = vsel %vm328, %v323, %v352
        %v357 = vmul.f32 %v353, %v353
        %v358 = vmul.f32 %v354, %v354
        %v359 = vmul.f32 %v355, %v355
        %v360 = vmul.f32 %v356, %v356
        %361 = vmatpush.msra.mxu0 1.0
        %362 = vmatpush.msra.mxu0 1.0
        %363 = vmatpush.msra.mxu0 1.0
        %364 = vmatpush.msra.mxu0 1.0
        %365 = vmatpush.msra.mxu0 1.0
        %366 = vmatpush.msra.mxu0 1.0
        %367 = vmatpush.msra.mxu0 1.0
        %368 = vmatpush.msra.mxu0 1.0
        %369 = vmatpush.msra.mxu0 1.0
        %370 = vmatpush.msra.mxu0 1.0
        %371 = vmatpush.msra.mxu0 1.0
        %372 = vmatpush.msra.mxu0 1.0
        %373 = vmatpush.msra.mxu0 1.0
        %374 = vmatpush.msra.mxu0 1.0
        %375 = vmatpush.msra.mxu0 1.0
        %376 = vmatpush.msra.mxu0 1.0
        %377 = vmatmul.f32.gmra.mxu0 %v353
        %v378 = vpop.f32.mrf.mxu0
        %v379 = vadd.f32 0.0, %v378
        %380 = vmatmul.f32.gmra.mxu0 %v354
        %v381 = vpop.f32.mrf.mxu0
        %v382 = vadd.f32 0.0, %v381
        %383 = vmatmul.f32.gmra.mxu0 %v355
        %v384 = vpop.f32.mrf.mxu0
        %v385 = vadd.f32 0.0, %v384
        %386 = vmatmul.f32.gmra.mxu0 %v356
        %v387 = vpop.f32.mrf.mxu0
        %v388 = vadd.f32 0.0, %v387
        %389 = vmatmul.f32.gmra.mxu0 %v357
        %v390 = vpop.f32.mrf.mxu0
        %v391 = vadd.f32 0.0, %v390
        %392 = vmatmul.f32.gmra.mxu0 %v358
        %v393 = vpop.f32.mrf.mxu0
        %v394 = vadd.f32 0.0, %v393
        %395 = vmatmul.f32.gmra.mxu0 %v359
        %v396 = vpop.f32.mrf.mxu0
        %v397 = vadd.f32 0.0, %v396
        %398 = vmatmul.f32.gmra.mxu0 %v360
        %v399 = vpop.f32.mrf.mxu0
        %v400 = vadd.f32 0.0, %v399
        %401 = vdwg.mxu0
        %v402 = vmul.f32 %v379, 0.0078125
        %v403 = vmul.f32 %v382, 0.0078125
        %v404 = vmul.f32 %v385, 0.0078125
        %v405 = vmul.f32 %v388, 0.0078125
        %v406 = vmul.f32 %v391, 0.0078125
        %v407 = vmul.f32 %v394, 0.0078125
        %v408 = vmul.f32 %v397, 0.0078125
        %v409 = vmul.f32 %v400, 0.0078125
        %v410 = vmul.f32 %v402, %v402
        %v411 = vmul.f32 %v403, %v403
        %v412 = vmul.f32 %v404, %v404
        %v413 = vmul.f32 %v405, %v405
        %v414 = vsub.f32 %v406, %v410
        %v415 = vsub.f32 %v407, %v411
        %v416 = vsub.f32 %v408, %v412
        %v417 = vsub.f32 %v409, %v413
        %v418 = vmax.f32 %v414, 0.0
        %v419 = vmax.f32 %v415, 0.0
        %v420 = vmax.f32 %v416, 0.0
        %v421 = vmax.f32 %v417, 0.0
        %v422 = vadd.f32 %v418, 1e-05
        %v423 = vadd.f32 %v419, 1e-05
        %v424 = vadd.f32 %v420, 1e-05
        %v425 = vadd.f32 %v421, 1e-05
        %v426 = vrsqrt.pop %v422
        %v427 = vmul.f32 %v426, %v422
        %v428 = vmul.f32 %v427, %v426
        %v429 = vmul.f32 0.5, %v428
        %v430 = vsub.f32 1.5, %v429
        %v431 = vmul.f32 %v426, %v430
        %vm432 = vweird.f32 %v422
        %vm433 = vweird.f32 %v426
        %vm434 = vmor %vm432, %vm433
        %v435 = vsel %vm434, %v426, %v431
        %v436 = vrsqrt.pop %v423
        %v437 = vmul.f32 %v436, %v423
        %v438 = vmul.f32 %v437, %v436
        %v439 = vmul.f32 0.5, %v438
        %v440 = vsub.f32 1.5, %v439
        %v441 = vmul.f32 %v436, %v440
        %vm442 = vweird.f32 %v423
        %vm443 = vweird.f32 %v436
        %vm444 = vmor %vm442, %vm443
        %v445 = vsel %vm444, %v436, %v441
        %v446 = vrsqrt.pop %v424
        %v447 = vmul.f32 %v446, %v424
        %v448 = vmul.f32 %v447, %v446
        %v449 = vmul.f32 0.5, %v448
        %v450 = vsub.f32 1.5, %v449
        %v451 = vmul.f32 %v446, %v450
        %vm452 = vweird.f32 %v424
        %vm453 = vweird.f32 %v446
        %vm454 = vmor %vm452, %vm453
        %v455 = vsel %vm454, %v446, %v451
        %v456 = vrsqrt.pop %v425
        %v457 = vmul.f32 %v456, %v425
        %v458 = vmul.f32 %v457, %v456
        %v459 = vmul.f32 0.5, %v458
        %v460 = vsub.f32 1.5, %v459
        %v461 = vmul.f32 %v456, %v460
        %vm462 = vweird.f32 %v425
        %vm463 = vweird.f32 %v456
        %vm464 = vmor %vm462, %vm463
        %v465 = vsel %vm464, %v456, %v461
        %466 = vrot.lane.b32.xlu0 %v273, 127
        %v467 = vpop.permute.xlu0 %466
        %468 = vrot.lane.b32.xlu0 %v274, 127
        %v469 = vpop.permute.xlu0 %468
        %470 = vrot.lane.b32.xlu0 %v275, 127
        %v471 = vpop.permute.xlu0 %470
        %472 = vrot.lane.b32.xlu0 %v276, 127
        %v473 = vpop.permute.xlu0 %472
        %v478 = vmul.f32 %v435, %v467
        %v479 = vmul.f32 %v445, %v469
        %v480 = vmul.f32 %v455, %v471
        %v481 = vmul.f32 %v465, %v473
        %483 = vset.pattern.permute.xlu0 0
        %484 = vperm.xlu0 %483, %v478
        %v485 = vpop.permute.xlu0 %484
        %488 = vset.pattern.permute.xlu0 0
        %489 = vperm.xlu0 %488, %v479
        %v490 = vpop.permute.xlu0 %489
        %493 = vset.pattern.permute.xlu0 0
        %494 = vperm.xlu0 %493, %v480
        %v495 = vpop.permute.xlu0 %494
        %498 = vset.pattern.permute.xlu0 0
        %499 = vperm.xlu0 %498, %v481
        %v500 = vpop.permute.xlu0 %499
        %v502 = vmul.f32 %v353, %v485
        %v503 = vmul.f32 %v354, %v490
        %v504 = vmul.f32 %v355, %v495
        %v505 = vmul.f32 %v356, %v500
        %v506 = vmul.f32 %v402, %v478
        %v507 = vmul.f32 %v403, %v479
        %v508 = vmul.f32 %v404, %v480
        %v509 = vmul.f32 %v405, %v481
        %514 = vrot.lane.b32.xlu0 %v506, 2
        %v515 = vpop.permute.xlu0 %514
        %516 = vrot.lane.b32.xlu0 %v507, 2
        %v517 = vpop.permute.xlu0 %516
        %518 = vrot.lane.b32.xlu0 %v508, 2
        %v519 = vpop.permute.xlu0 %518
        %520 = vrot.lane.b32.xlu0 %v509, 2
        %v521 = vpop.permute.xlu0 %520
        %v526 = vsub.f32 %v273, %v515
        %v527 = vsub.f32 %v274, %v517
        %v528 = vsub.f32 %v275, %v519
        %v529 = vsub.f32 %v276, %v521
        %531 = vset.pattern.permute.xlu0 2
        %532 = vperm.xlu0 %531, %v526
        %v533 = vpop.permute.xlu0 %532
        %536 = vset.pattern.permute.xlu0 2
        %537 = vperm.xlu0 %536, %v527
        %v538 = vpop.permute.xlu0 %537
        %541 = vset.pattern.permute.xlu0 2
        %542 = vperm.xlu0 %541, %v528
        %v543 = vpop.permute.xlu0 %542
        %546 = vset.pattern.permute.xlu0 2
        %547 = vperm.xlu0 %546, %v529
        %v548 = vpop.permute.xlu0 %547
        %v550 = vadd.f32 %v502, %v533
        %v551 = vadd.f32 %v503, %v538
        %v552 = vadd.f32 %v504, %v543
        %v553 = vadd.f32 %v505, %v548
        %554 = vrot.lane.b32.xlu0 %v550, 2
        %v555 = vpop.permute.xlu0 %554
        %556 = vrot.lane.b32.xlu0 %v551, 2
        %v557 = vpop.permute.xlu0 %556
        %558 = vrot.lane.b32.xlu0 %v552, 2
        %v559 = vpop.permute.xlu0 %558
        %560 = vrot.lane.b32.xlu0 %v553, 2
        %v561 = vpop.permute.xlu0 %560
        %vm562 = vcmp.ge.s32.totalorder %v272, 2
        %v563 = vsel %vm562, %v555, 0.0
        %v564 = vsel %vm562, %v557, 0.0
        %v565 = vsel %vm562, %v559, 0.0
        %v566 = vsel %vm562, %v561, 0.0
        %567 = vrot.lane.b32.xlu0 %v550, 1
        %v568 = vpop.permute.xlu0 %567
        %569 = vrot.lane.b32.xlu0 %v551, 1
        %v570 = vpop.permute.xlu0 %569
        %571 = vrot.lane.b32.xlu0 %v552, 1
        %v572 = vpop.permute.xlu0 %571
        %573 = vrot.lane.b32.xlu0 %v553, 1
        %v574 = vpop.permute.xlu0 %573
        %vm575 = vcmp.ge.s32.totalorder %v272, 1
        %v576 = vsel %vm575, %v568, 0.0
        %v577 = vsel %vm575, %v570, 0.0
        %v578 = vsel %vm575, %v572, 0.0
        %v579 = vsel %vm575, %v574, 0.0
        %v580 = vld [vmem:[#allocation2] sm:$0xff]
        %v581 = vld [vmem:[#allocation2 + $0x8] sm:$0xff]
        %v582 = vld [vmem:[#allocation2 + $0x10] sm:$0xff]
        %v583 = vld [vmem:[#allocation2 + $0x18] sm:$0xff]
        %vm584 = vcmask 785408
        %v586 = vsel %vm584, %v580, 0
        %v589 = vsel %vm584, %v581, 0
        %v592 = vsel %vm584, %v582, 0
        %v595 = vsel %vm584, %v583, 0
        %597 = vmatpush.msra.mxu0 0.0
        %598 = vmatpush.msra.mxu0 0.0
        %599 = vmatpush.msra.mxu0 0.0
        %600 = vmatpush.msra.mxu0 0.0
        %601 = vmatpush.msra.mxu0 %v553
        %602 = vmatpush.msra.mxu0 %v552
        %603 = vmatpush.msra.mxu0 %v551
        %604 = vmatpush.msra.mxu0 %v550
        %605 = vmatpush.msra.mxu0 %v579
        %606 = vmatpush.msra.mxu0 %v578
        %607 = vmatpush.msra.mxu0 %v577
        %608 = vmatpush.msra.mxu0 %v576
        %609 = vmatpush.msra.mxu0 %v566
        %610 = vmatpush.msra.mxu0 %v565
        %611 = vmatpush.msra.mxu0 %v564
        %612 = vmatpush.msra.mxu0 %v563
        %613 = vmatmul.f32.gmra.mxu0 %v586
        %v614 = vpop.f32.mrf.mxu0
        %v615 = vadd.f32 0.0, %v614
        %616 = vmatmul.f32.gmra.mxu0 %v589
        %v617 = vpop.f32.mrf.mxu0
        %v618 = vadd.f32 0.0, %v617
        %619 = vmatmul.f32.gmra.mxu0 %v592
        %v620 = vpop.f32.mrf.mxu0
        %v621 = vadd.f32 0.0, %v620
        %622 = vmatmul.f32.gmra.mxu0 %v595
        %v623 = vpop.f32.mrf.mxu0
        %v624 = vadd.f32 0.0, %v623
        %625 = vdwg.mxu0
        %v626 = vxor.u32 %v621, 2147483648
        %v627 = vxor.u32 %v624, 2147483648
        %v628 = vmul.f32 %v626, 1.442695
        %v629 = vpow.pop %v628
        %v630 = vmul.f32 %v627, 1.442695
        %v631 = vpow.pop %v630
        %v632 = vadd.f32 %v629, 1.0
        %v633 = vadd.f32 %v631, 1.0
        %v634 = vrcp.pop %v632
        %v635 = vmul.f32 %v632, %v634
        %v636 = vsub.f32 1.0, %v635
        %v637 = vmul.f32 %v634, %v636
        %v638 = vadd.f32 %v634, %v637
        %vm639 = vweird.f32 %v632
        %vm640 = vweird.f32 %v634
        %vm641 = vmor %vm639, %vm640
        %v642 = vsel %vm641, %v634, %v638
        %v643 = vand.u32 2147483647, %v632
        %vm644 = vcmp.eq.f32.partialorder %v643, 8.507059e+37
        %v645 = vand.u32 %v632, 2147483648
        %v646 = vor.u32 1.1754944e-38, %v645
        %v647 = vsel %vm644, %v646, %v642
        %v648 = vmul.f32 1.0, %v647
        %v649 = vrcp.pop %v633
        %v650 = vmul.f32 %v633, %v649
        %v651 = vsub.f32 1.0, %v650
        %v652 = vmul.f32 %v649, %v651
        %v653 = vadd.f32 %v649, %v652
        %vm654 = vweird.f32 %v633
        %vm655 = vweird.f32 %v649
        %vm656 = vmor %vm654, %vm655
        %v657 = vsel %vm656, %v649, %v653
        %v658 = vand.u32 2147483647, %v633
        %vm659 = vcmp.eq.f32.partialorder %v658, 8.507059e+37
        %v660 = vand.u32 %v633, 2147483648
        %v661 = vor.u32 1.1754944e-38, %v660
        %v662 = vsel %vm659, %v661, %v657
        %v663 = vmul.f32 1.0, %v662
        %v664 = vmul.f32 %v615, %v648
        %v665 = vmul.f32 %v618, %v663
        %vm666 = vcmp.gt.f32.partialorder %v664, 0.0
        %vm667 = vcmp.gt.f32.partialorder %v665, 0.0
        %669 = vset.pattern.permute.xlu0 0
        %670 = vperm.xlu0 %669, %v277
        %v671 = vpop.permute.xlu0 %670
        %674 = vset.pattern.permute.xlu0 0
        %675 = vperm.xlu0 %674, %v278
        %v676 = vpop.permute.xlu0 %675
        %v678 = vmul.f32 %v671, %v664
        %v679 = vmul.f32 %v676, %v665
        %v680 = vsel %vm666, %v664, %v678
        %v681 = vsel %vm667, %v665, %v679
        %v682 = vmul.f32 %v680, %v680
        %v683 = vmul.f32 %v681, %v681
        %684 = vmatpush.msra.mxu0 1.0
        %685 = vmatpush.msra.mxu0 1.0
        %686 = vmatpush.msra.mxu0 1.0
        %687 = vmatpush.msra.mxu0 1.0
        %688 = vmatpush.msra.mxu0 1.0
        %689 = vmatpush.msra.mxu0 1.0
        %690 = vmatpush.msra.mxu0 1.0
        %691 = vmatpush.msra.mxu0 1.0
        %692 = vmatpush.msra.mxu0 1.0
        %693 = vmatpush.msra.mxu0 1.0
        %694 = vmatpush.msra.mxu0 1.0
        %695 = vmatpush.msra.mxu0 1.0
        %696 = vmatpush.msra.mxu0 1.0
        %697 = vmatpush.msra.mxu0 1.0
        %698 = vmatpush.msra.mxu0 1.0
        %699 = vmatpush.msra.mxu0 1.0
        %700 = vmatmul.f32.gmra.mxu0 %v680
        %v701 = vpop.f32.mrf.mxu0
        %v702 = vadd.f32 0.0, %v701
        %703 = vmatmul.f32.gmra.mxu0 %v681
        %v704 = vpop.f32.mrf.mxu0
        %v705 = vadd.f32 0.0, %v704
        %706 = vmatmul.f32.gmra.mxu0 %v682
        %v707 = vpop.f32.mrf.mxu0
        %v708 = vadd.f32 0.0, %v707
        %709 = vmatmul.f32.gmra.mxu0 %v683
        %v710 = vpop.f32.mrf.mxu0
        %v711 = vadd.f32 0.0, %v710
        %712 = vdwg.mxu0
        %v713 = vmul.f32 %v702, 0.0078125
        %v714 = vmul.f32 %v705, 0.0078125
        %v715 = vmul.f32 %v708, 0.0078125
        %v716 = vmul.f32 %v711, 0.0078125
        %v717 = vmul.f32 %v713, %v713
        %v718 = vmul.f32 %v714, %v714
        %v719 = vsub.f32 %v715, %v717
        %v720 = vsub.f32 %v716, %v718
        %v721 = vmax.f32 %v719, 0.0
        %v722 = vmax.f32 %v720, 0.0
        %v723 = vadd.f32 %v721, 1e-05
        %v724 = vadd.f32 %v722, 1e-05
        %v725 = vrsqrt.pop %v723
        %v726 = vmul.f32 %v725, %v723
        %v727 = vmul.f32 %v726, %v725
        %v728 = vmul.f32 0.5, %v727
        %v729 = vsub.f32 1.5, %v728
        %v730 = vmul.f32 %v725, %v729
        %vm731 = vweird.f32 %v723
        %vm732 = vweird.f32 %v725
        %vm733 = vmor %vm731, %vm732
        %v734 = vsel %vm733, %v725, %v730
        %v735 = vrsqrt.pop %v724
        %v736 = vmul.f32 %v735, %v724
        %v737 = vmul.f32 %v736, %v735
        %v738 = vmul.f32 0.5, %v737
        %v739 = vsub.f32 1.5, %v738
        %v740 = vmul.f32 %v735, %v739
        %vm741 = vweird.f32 %v724
        %vm742 = vweird.f32 %v735
        %vm743 = vmor %vm741, %vm742
        %v744 = vsel %vm743, %v735, %v740
        %745 = vrot.lane.b32.xlu0 %v277, 127
        %v746 = vpop.permute.xlu0 %745
        %747 = vrot.lane.b32.xlu0 %v278, 127
        %v748 = vpop.permute.xlu0 %747
        %v751 = vmul.f32 %v734, %v746
        %v752 = vmul.f32 %v744, %v748
        %754 = vset.pattern.permute.xlu0 0
        %755 = vperm.xlu0 %754, %v751
        %v756 = vpop.permute.xlu0 %755
        %759 = vset.pattern.permute.xlu0 0
        %760 = vperm.xlu0 %759, %v752
        %v761 = vpop.permute.xlu0 %760
        %v763 = vmul.f32 %v680, %v756
        %v764 = vmul.f32 %v681, %v761
        %v765 = vmul.f32 %v713, %v751
        %v766 = vmul.f32 %v714, %v752
        %769 = vrot.lane.b32.xlu0 %v765, 2
        %v770 = vpop.permute.xlu0 %769
        %771 = vrot.lane.b32.xlu0 %v766, 2
        %v772 = vpop.permute.xlu0 %771
        %v775 = vsub.f32 %v277, %v770
        %v776 = vsub.f32 %v278, %v772
        %778 = vset.pattern.permute.xlu0 2
        %779 = vperm.xlu0 %778, %v775
        %v780 = vpop.permute.xlu0 %779
        %783 = vset.pattern.permute.xlu0 2
        %784 = vperm.xlu0 %783, %v776
        %v785 = vpop.permute.xlu0 %784
        %v787 = vadd.f32 %v763, %v780
        %v788 = vadd.f32 %v764, %v785
        %v789 = vld [vmem:[%s3] sm:$0xff]
        %v790 = vld [vmem:[%s3 + $0x8] sm:$0xff]
        %v791 = vld [vmem:[%s3 + $0x10] sm:$0xff]
        %v792 = vld [vmem:[%s3 + $0x18] sm:$0xff]
        %vm793 = vcmask 130048
        %v795 = vsel %vm793, %v789, 0
        %v798 = vsel %vm793, %v790, 0
        %v801 = vsel %vm793, %v791, 0
        %v804 = vsel %vm793, %v792, 0
        %806 = vmatpush.msra.mxu0 0.0
        %807 = vmatpush.msra.mxu0 0.0
        %808 = vmatpush.msra.mxu0 0.0
        %809 = vmatpush.msra.mxu0 0.0
        %810 = vmatpush.msra.mxu0 0.0
        %811 = vmatpush.msra.mxu0 0.0
        %812 = vmatpush.msra.mxu0 0.0
        %813 = vmatpush.msra.mxu0 0.0
        %814 = vmatpush.msra.mxu0 0.0
        %815 = vmatpush.msra.mxu0 0.0
        %816 = vmatpush.msra.mxu0 0.0
        %817 = vmatpush.msra.mxu0 0.0
        %818 = vmatpush.msra.mxu0 0.0
        %819 = vmatpush.msra.mxu0 0.0
        %820 = vmatpush.msra.mxu0 %v788
        %821 = vmatpush.msra.mxu0 %v787
        %822 = vmatmul.f32.gmra.mxu0 %v795
        %v823 = vpop.f32.mrf.mxu0
        %v824 = vadd.f32 0.0, %v823
        %825 = vmatmul.f32.gmra.mxu0 %v798
        %v826 = vpop.f32.mrf.mxu0
        %v827 = vadd.f32 0.0, %v826
        %828 = vmatmul.f32.gmra.mxu0 %v801
        %v829 = vpop.f32.mrf.mxu0
        %v830 = vadd.f32 0.0, %v829
        %831 = vmatmul.f32.gmra.mxu0 %v804
        %v832 = vpop.f32.mrf.mxu0
        %v833 = vadd.f32 0.0, %v832
        %834 = vdwg.mxu0
        %v835 = vadd.f32 %v267, %v824
        %v836 = vadd.f32 %v268, %v827
        %v837 = vadd.f32 %v269, %v830
        %v838 = vadd.f32 %v270, %v833
        %s839 = scalar_lea.vmem %s4, 32
        %v840 = vld [vmem:[%s839] sm:$0xff]
        %v841 = vld [vmem:[%s839 + $0x8] sm:$0xff]
        %v842 = vld [vmem:[%s839 + $0x10] sm:$0xff]
        %v843 = vld [vmem:[%s839 + $0x18] sm:$0xff]
        %s844 = scalar_lea.vmem %s5, 16
        %v845 = vld [vmem:[%s844] sm:$0xff]
        %v846 = vld [vmem:[%s844 + $0x8] sm:$0xff]
        %s847 = scalar_lea.vmem %s1, 32
        %v848 = vld [vmem:[%s847] sm:$0xff]
        %v849 = vld [vmem:[%s847 + $0x8] sm:$0xff]
        %v850 = vld [vmem:[%s847 + $0x10] sm:$0xff]
        %v851 = vld [vmem:[%s847 + $0x18] sm:$0xff]
        %v853 = vsel %vm283, %v848, 0
        %v856 = vsel %vm283, %v849, 0
        %v859 = vsel %vm283, %v850, 0
        %v862 = vsel %vm283, %v851, 0
        %864 = vmatpush.msra.mxu0 0.0
        %865 = vmatpush.msra.mxu0 0.0
        %866 = vmatpush.msra.mxu0 0.0
        %867 = vmatpush.msra.mxu0 0.0
        %868 = vmatpush.msra.mxu0 0.0
        %869 = vmatpush.msra.mxu0 0.0
        %870 = vmatpush.msra.mxu0 0.0
        %871 = vmatpush.msra.mxu0 0.0
        %872 = vmatpush.msra.mxu0 0.0
        %873 = vmatpush.msra.mxu0 0.0
        %874 = vmatpush.msra.mxu0 0.0
        %875 = vmatpush.msra.mxu0 0.0
        %876 = vmatpush.msra.mxu0 %v838
        %877 = vmatpush.msra.mxu0 %v837
        %878 = vmatpush.msra.mxu0 %v836
        %879 = vmatpush.msra.mxu0 %v835
        %880 = vmatmul.f32.gmra.mxu0 %v853
        %v881 = vpop.f32.mrf.mxu0
        %v882 = vadd.f32 0.0, %v881
        %883 = vmatmul.f32.gmra.mxu0 %v856
        %v884 = vpop.f32.mrf.mxu0
        %v885 = vadd.f32 0.0, %v884
        %886 = vmatmul.f32.gmra.mxu0 %v859
        %v887 = vpop.f32.mrf.mxu0
        %v888 = vadd.f32 0.0, %v887
        %889 = vmatmul.f32.gmra.mxu0 %v862
        %v890 = vpop.f32.mrf.mxu0
        %v891 = vadd.f32 0.0, %v890
        %892 = vdwg.mxu0
        %vm893 = vcmp.gt.f32.partialorder %v882, 0.0
        %vm894 = vcmp.gt.f32.partialorder %v885, 0.0
        %vm895 = vcmp.gt.f32.partialorder %v888, 0.0
        %vm896 = vcmp.gt.f32.partialorder %v891, 0.0
        %898 = vset.pattern.permute.xlu0 0
        %899 = vperm.xlu0 %898, %v840
        %v900 = vpop.permute.xlu0 %899
        %903 = vset.pattern.permute.xlu0 0
        %904 = vperm.xlu0 %903, %v841
        %v905 = vpop.permute.xlu0 %904
        %908 = vset.pattern.permute.xlu0 0
        %909 = vperm.xlu0 %908, %v842
        %v910 = vpop.permute.xlu0 %909
        %913 = vset.pattern.permute.xlu0 0
        %914 = vperm.xlu0 %913, %v843
        %v915 = vpop.permute.xlu0 %914
        %v917 = vmul.f32 %v900, %v882
        %v918 = vmul.f32 %v905, %v885
        %v919 = vmul.f32 %v910, %v888
        %v920 = vmul.f32 %v915, %v891
        %v921 = vsel %vm893, %v882, %v917
        %v922 = vsel %vm894, %v885, %v918
        %v923 = vsel %vm895, %v888, %v919
        %v924 = vsel %vm896, %v891, %v920
        %v925 = vmul.f32 %v921, %v921
        %v926 = vmul.f32 %v922, %v922
        %v927 = vmul.f32 %v923, %v923
        %v928 = vmul.f32 %v924, %v924
        %929 = vmatpush.msra.mxu0 1.0
        %930 = vmatpush.msra.mxu0 1.0
        %931 = vmatpush.msra.mxu0 1.0
        %932 = vmatpush.msra.mxu0 1.0
        %933 = vmatpush.msra.mxu0 1.0
        %934 = vmatpush.msra.mxu0 1.0
        %935 = vmatpush.msra.mxu0 1.0
        %936 = vmatpush.msra.mxu0 1.0
        %937 = vmatpush.msra.mxu0 1.0
        %938 = vmatpush.msra.mxu0 1.0
        %939 = vmatpush.msra.mxu0 1.0
        %940 = vmatpush.msra.mxu0 1.0
        %941 = vmatpush.msra.mxu0 1.0
        %942 = vmatpush.msra.mxu0 1.0
        %943 = vmatpush.msra.mxu0 1.0
        %944 = vmatpush.msra.mxu0 1.0
        %945 = vmatmul.f32.gmra.mxu0 %v921
        %v946 = vpop.f32.mrf.mxu0
        %v947 = vadd.f32 0.0, %v946
        %948 = vmatmul.f32.gmra.mxu0 %v922
        %v949 = vpop.f32.mrf.mxu0
        %v950 = vadd.f32 0.0, %v949
        %951 = vmatmul.f32.gmra.mxu0 %v923
        %v952 = vpop.f32.mrf.mxu0
        %v953 = vadd.f32 0.0, %v952
        %954 = vmatmul.f32.gmra.mxu0 %v924
        %v955 = vpop.f32.mrf.mxu0
        %v956 = vadd.f32 0.0, %v955
        %957 = vmatmul.f32.gmra.mxu0 %v925
        %v958 = vpop.f32.mrf.mxu0
        %v959 = vadd.f32 0.0, %v958
        %960 = vmatmul.f32.gmra.mxu0 %v926
        %v961 = vpop.f32.mrf.mxu0
        %v962 = vadd.f32 0.0, %v961
        %963 = vmatmul.f32.gmra.mxu0 %v927
        %v964 = vpop.f32.mrf.mxu0
        %v965 = vadd.f32 0.0, %v964
        %966 = vmatmul.f32.gmra.mxu0 %v928
        %v967 = vpop.f32.mrf.mxu0
        %v968 = vadd.f32 0.0, %v967
        %969 = vdwg.mxu0
        %v970 = vmul.f32 %v947, 0.0078125
        %v971 = vmul.f32 %v950, 0.0078125
        %v972 = vmul.f32 %v953, 0.0078125
        %v973 = vmul.f32 %v956, 0.0078125
        %v974 = vmul.f32 %v959, 0.0078125
        %v975 = vmul.f32 %v962, 0.0078125
        %v976 = vmul.f32 %v965, 0.0078125
        %v977 = vmul.f32 %v968, 0.0078125
        %v978 = vmul.f32 %v970, %v970
        %v979 = vmul.f32 %v971, %v971
        %v980 = vmul.f32 %v972, %v972
        %v981 = vmul.f32 %v973, %v973
        %v982 = vsub.f32 %v974, %v978
        %v983 = vsub.f32 %v975, %v979
        %v984 = vsub.f32 %v976, %v980
        %v985 = vsub.f32 %v977, %v981
        %v986 = vmax.f32 %v982, 0.0
        %v987 = vmax.f32 %v983, 0.0
        %v988 = vmax.f32 %v984, 0.0
        %v989 = vmax.f32 %v985, 0.0
        %v990 = vadd.f32 %v986, 1e-05
        %v991 = vadd.f32 %v987, 1e-05
        %v992 = vadd.f32 %v988, 1e-05
        %v993 = vadd.f32 %v989, 1e-05
        %v994 = vrsqrt.pop %v990
        %v995 = vmul.f32 %v994, %v990
        %v996 = vmul.f32 %v995, %v994
        %v997 = vmul.f32 0.5, %v996
        %v998 = vsub.f32 1.5, %v997
        %v999 = vmul.f32 %v994, %v998
        %vm1000 = vweird.f32 %v990
        %vm1001 = vweird.f32 %v994
        %vm1002 = vmor %vm1000, %vm1001
        %v1003 = vsel %vm1002, %v994, %v999
        %v1004 = vrsqrt.pop %v991
        %v1005 = vmul.f32 %v1004, %v991
        %v1006 = vmul.f32 %v1005, %v1004
        %v1007 = vmul.f32 0.5, %v1006
        %v1008 = vsub.f32 1.5, %v1007
        %v1009 = vmul.f32 %v1004, %v1008
        %vm1010 = vweird.f32 %v991
        %vm1011 = vweird.f32 %v1004
        %vm1012 = vmor %vm1010, %vm1011
        %v1013 = vsel %vm1012, %v1004, %v1009
        %v1014 = vrsqrt.pop %v992
        %v1015 = vmul.f32 %v1014, %v992
        %v1016 = vmul.f32 %v1015, %v1014
        %v1017 = vmul.f32 0.5, %v1016
        %v1018 = vsub.f32 1.5, %v1017
        %v1019 = vmul.f32 %v1014, %v1018
        %vm1020 = vweird.f32 %v992
        %vm1021 = vweird.f32 %v1014
        %vm1022 = vmor %vm1020, %vm1021
        %v1023 = vsel %vm1022, %v1014, %v1019
        %v1024 = vrsqrt.pop %v993
        %v1025 = vmul.f32 %v1024, %v993
        %v1026 = vmul.f32 %v1025, %v1024
        %v1027 = vmul.f32 0.5, %v1026
        %v1028 = vsub.f32 1.5, %v1027
        %v1029 = vmul.f32 %v1024, %v1028
        %vm1030 = vweird.f32 %v993
        %vm1031 = vweird.f32 %v1024
        %vm1032 = vmor %vm1030, %vm1031
        %v1033 = vsel %vm1032, %v1024, %v1029
        %1034 = vrot.lane.b32.xlu0 %v840, 127
        %v1035 = vpop.permute.xlu0 %1034
        %1036 = vrot.lane.b32.xlu0 %v841, 127
        %v1037 = vpop.permute.xlu0 %1036
        %1038 = vrot.lane.b32.xlu0 %v842, 127
        %v1039 = vpop.permute.xlu0 %1038
        %1040 = vrot.lane.b32.xlu0 %v843, 127
        %v1041 = vpop.permute.xlu0 %1040
        %v1046 = vmul.f32 %v1003, %v1035
        %v1047 = vmul.f32 %v1013, %v1037
        %v1048 = vmul.f32 %v1023, %v1039
        %v1049 = vmul.f32 %v1033, %v1041
        %1051 = vset.pattern.permute.xlu0 0
        %1052 = vperm.xlu0 %1051, %v1046
        %v1053 = vpop.permute.xlu0 %1052
        %1056 = vset.pattern.permute.xlu0 0
        %1057 = vperm.xlu0 %1056, %v1047
        %v1058 = vpop.permute.xlu0 %1057
        %1061 = vset.pattern.permute.xlu0 0
        %1062 = vperm.xlu0 %1061, %v1048
        %v1063 = vpop.permute.xlu0 %1062
        %1066 = vset.pattern.permute.xlu0 0
        %1067 = vperm.xlu0 %1066, %v1049
        %v1068 = vpop.permute.xlu0 %1067
        %v1070 = vmul.f32 %v921, %v1053
        %v1071 = vmul.f32 %v922, %v1058
        %v1072 = vmul.f32 %v923, %v1063
        %v1073 = vmul.f32 %v924, %v1068
        %v1074 = vmul.f32 %v970, %v1046
        %v1075 = vmul.f32 %v971, %v1047
        %v1076 = vmul.f32 %v972, %v1048
        %v1077 = vmul.f32 %v973, %v1049
        %1082 = vrot.lane.b32.xlu0 %v1074, 2
        %v1083 = vpop.permute.xlu0 %1082
        %1084 = vrot.lane.b32.xlu0 %v1075, 2
        %v1085 = vpop.permute.xlu0 %1084
        %1086 = vrot.lane.b32.xlu0 %v1076, 2
        %v1087 = vpop.permute.xlu0 %1086
        %1088 = vrot.lane.b32.xlu0 %v1077, 2
        %v1089 = vpop.permute.xlu0 %1088
        %v1094 = vsub.f32 %v840, %v1083
        %v1095 = vsub.f32 %v841, %v1085
        %v1096 = vsub.f32 %v842, %v1087
        %v1097 = vsub.f32 %v843, %v1089
        %1099 = vset.pattern.permute.xlu0 2
        %1100 = vperm.xlu0 %1099, %v1094
        %v1101 = vpop.permute.xlu0 %1100
        %1104 = vset.pattern.permute.xlu0 2
        %1105 = vperm.xlu0 %1104, %v1095
        %v1106 = vpop.permute.xlu0 %1105
        %1109 = vset.pattern.permute.xlu0 2
        %1110 = vperm.xlu0 %1109, %v1096
        %v1111 = vpop.permute.xlu0 %1110
        %1114 = vset.pattern.permute.xlu0 2
        %1115 = vperm.xlu0 %1114, %v1097
        %v1116 = vpop.permute.xlu0 %1115
        %v1118 = vadd.f32 %v1070, %v1101
        %v1119 = vadd.f32 %v1071, %v1106
        %v1120 = vadd.f32 %v1072, %v1111
        %v1121 = vadd.f32 %v1073, %v1116
        %1122 = vrot.lane.b32.xlu0 %v1118, 4
        %v1123 = vpop.permute.xlu0 %1122
        %1124 = vrot.lane.b32.xlu0 %v1119, 4
        %v1125 = vpop.permute.xlu0 %1124
        %1126 = vrot.lane.b32.xlu0 %v1120, 4
        %v1127 = vpop.permute.xlu0 %1126
        %1128 = vrot.lane.b32.xlu0 %v1121, 4
        %v1129 = vpop.permute.xlu0 %1128
        %vm1130 = vcmp.ge.s32.totalorder %v272, 4
        %v1131 = vsel %vm1130, %v1123, 0.0
        %v1132 = vsel %vm1130, %v1125, 0.0
        %v1133 = vsel %vm1130, %v1127, 0.0
        %v1134 = vsel %vm1130, %v1129, 0.0
        %1135 = vrot.lane.b32.xlu0 %v1118, 2
        %v1136 = vpop.permute.xlu0 %1135
        %1137 = vrot.lane.b32.xlu0 %v1119, 2
        %v1138 = vpop.permute.xlu0 %1137
        %1139 = vrot.lane.b32.xlu0 %v1120, 2
        %v1140 = vpop.permute.xlu0 %1139
        %1141 = vrot.lane.b32.xlu0 %v1121, 2
        %v1142 = vpop.permute.xlu0 %1141
        %v1143 = vsel %vm562, %v1136, 0.0
        %v1144 = vsel %vm562, %v1138, 0.0
        %v1145 = vsel %vm562, %v1140, 0.0
        %v1146 = vsel %vm562, %v1142, 0.0
        %s1147 = scalar_lea.vmem [#allocation2], 32
        %v1148 = vld [vmem:[%s1147] sm:$0xff]
        %v1149 = vld [vmem:[%s1147 + $0x8] sm:$0xff]
        %v1150 = vld [vmem:[%s1147 + $0x10] sm:$0xff]
        %v1151 = vld [vmem:[%s1147 + $0x18] sm:$0xff]
        %v1153 = vsel %vm584, %v1148, 0
        %v1156 = vsel %vm584, %v1149, 0
        %v1159 = vsel %vm584, %v1150, 0
        %v1162 = vsel %vm584, %v1151, 0
        %1164 = vmatpush.msra.mxu0 0.0
        %1165 = vmatpush.msra.mxu0 0.0
        %1166 = vmatpush.msra.mxu0 0.0
        %1167 = vmatpush.msra.mxu0 0.0
        %1168 = vmatpush.msra.mxu0 %v1121
        %1169 = vmatpush.msra.mxu0 %v1120
        %1170 = vmatpush.msra.mxu0 %v1119
        %1171 = vmatpush.msra.mxu0 %v1118
        %1172 = vmatpush.msra.mxu0 %v1146
        %1173 = vmatpush.msra.mxu0 %v1145
        %1174 = vmatpush.msra.mxu0 %v1144
        %1175 = vmatpush.msra.mxu0 %v1143
        %1176 = vmatpush.msra.mxu0 %v1134
        %1177 = vmatpush.msra.mxu0 %v1133
        %1178 = vmatpush.msra.mxu0 %v1132
        %1179 = vmatpush.msra.mxu0 %v1131
        %1180 = vmatmul.f32.gmra.mxu0 %v1153
        %v1181 = vpop.f32.mrf.mxu0
        %v1182 = vadd.f32 0.0, %v1181
        %1183 = vmatmul.f32.gmra.mxu0 %v1156
        %v1184 = vpop.f32.mrf.mxu0
        %v1185 = vadd.f32 0.0, %v1184
        %1186 = vmatmul.f32.gmra.mxu0 %v1159
        %v1187 = vpop.f32.mrf.mxu0
        %v1188 = vadd.f32 0.0, %v1187
        %1189 = vmatmul.f32.gmra.mxu0 %v1162
        %v1190 = vpop.f32.mrf.mxu0
        %v1191 = vadd.f32 0.0, %v1190
        %1192 = vdwg.mxu0
        %v1193 = vxor.u32 %v1188, 2147483648
        %v1194 = vxor.u32 %v1191, 2147483648
        %v1195 = vmul.f32 %v1193, 1.442695
        %v1196 = vpow.pop %v1195
        %v1197 = vmul.f32 %v1194, 1.442695
        %v1198 = vpow.pop %v1197
        %v1199 = vadd.f32 %v1196, 1.0
        %v1200 = vadd.f32 %v1198, 1.0
        %v1201 = vrcp.pop %v1199
        %v1202 = vmul.f32 %v1199, %v1201
        %v1203 = vsub.f32 1.0, %v1202
        %v1204 = vmul.f32 %v1201, %v1203
        %v1205 = vadd.f32 %v1201, %v1204
        %vm1206 = vweird.f32 %v1199
        %vm1207 = vweird.f32 %v1201
        %vm1208 = vmor %vm1206, %vm1207
        %v1209 = vsel %vm1208, %v1201, %v1205
        %v1210 = vand.u32 2147483647, %v1199
        %vm1211 = vcmp.eq.f32.partialorder %v1210, 8.507059e+37
        %v1212 = vand.u32 %v1199, 2147483648
        %v1213 = vor.u32 1.1754944e-38, %v1212
        %v1214 = vsel %vm1211, %v1213, %v1209
        %v1215 = vmul.f32 1.0, %v1214
        %v1216 = vrcp.pop %v1200
        %v1217 = vmul.f32 %v1200, %v1216
        %v1218 = vsub.f32 1.0, %v1217
        %v1219 = vmul.f32 %v1216, %v1218
        %v1220 = vadd.f32 %v1216, %v1219
        %vm1221 = vweird.f32 %v1200
        %vm1222 = vweird.f32 %v1216
        %vm1223 = vmor %vm1221, %vm1222
        %v1224 = vsel %vm1223, %v1216, %v1220
        %v1225 = vand.u32 2147483647, %v1200
        %vm1226 = vcmp.eq.f32.partialorder %v1225, 8.507059e+37
        %v1227 = vand.u32 %v1200, 2147483648
        %v1228 = vor.u32 1.1754944e-38, %v1227
        %v1229 = vsel %vm1226, %v1228, %v1224
        %v1230 = vmul.f32 1.0, %v1229
        %v1231 = vmul.f32 %v1182, %v1215
        %v1232 = vmul.f32 %v1185, %v1230
        %vm1233 = vcmp.gt.f32.partialorder %v1231, 0.0
        %vm1234 = vcmp.gt.f32.partialorder %v1232, 0.0
        %1236 = vset.pattern.permute.xlu0 0
        %1237 = vperm.xlu0 %1236, %v845
        %v1238 = vpop.permute.xlu0 %1237
        %1241 = vset.pattern.permute.xlu0 0
        %1242 = vperm.xlu0 %1241, %v846
        %v1243 = vpop.permute.xlu0 %1242
        %v1245 = vmul.f32 %v1238, %v1231
        %v1246 = vmul.f32 %v1243, %v1232
        %v1247 = vsel %vm1233, %v1231, %v1245
        %v1248 = vsel %vm1234, %v1232, %v1246
        %v1249 = vmul.f32 %v1247, %v1247
        %v1250 = vmul.f32 %v1248, %v1248
        %1251 = vmatpush.msra.mxu0 1.0
        %1252 = vmatpush.msra.mxu0 1.0
        %1253 = vmatpush.msra.mxu0 1.0
        %1254 = vmatpush.msra.mxu0 1.0
        %1255 = vmatpush.msra.mxu0 1.0
        %1256 = vmatpush.msra.mxu0 1.0
        %1257 = vmatpush.msra.mxu0 1.0
        %1258 = vmatpush.msra.mxu0 1.0
        %1259 = vmatpush.msra.mxu0 1.0
        %1260 = vmatpush.msra.mxu0 1.0
        %1261 = vmatpush.msra.mxu0 1.0
        %1262 = vmatpush.msra.mxu0 1.0
        %1263 = vmatpush.msra.mxu0 1.0
        %1264 = vmatpush.msra.mxu0 1.0
        %1265 = vmatpush.msra.mxu0 1.0
        %1266 = vmatpush.msra.mxu0 1.0
        %1267 = vmatmul.f32.gmra.mxu0 %v1247
        %v1268 = vpop.f32.mrf.mxu0
        %v1269 = vadd.f32 0.0, %v1268
        %1270 = vmatmul.f32.gmra.mxu0 %v1248
        %v1271 = vpop.f32.mrf.mxu0
        %v1272 = vadd.f32 0.0, %v1271
        %1273 = vmatmul.f32.gmra.mxu0 %v1249
        %v1274 = vpop.f32.mrf.mxu0
        %v1275 = vadd.f32 0.0, %v1274
        %1276 = vmatmul.f32.gmra.mxu0 %v1250
        %v1277 = vpop.f32.mrf.mxu0
        %v1278 = vadd.f32 0.0, %v1277
        %1279 = vdwg.mxu0
        %v1280 = vmul.f32 %v1269, 0.0078125
        %v1281 = vmul.f32 %v1272, 0.0078125
        %v1282 = vmul.f32 %v1275, 0.0078125
        %v1283 = vmul.f32 %v1278, 0.0078125
        %v1284 = vmul.f32 %v1280, %v1280
        %v1285 = vmul.f32 %v1281, %v1281
        %v1286 = vsub.f32 %v1282, %v1284
        %v1287 = vsub.f32 %v1283, %v1285
        %v1288 = vmax.f32 %v1286, 0.0
        %v1289 = vmax.f32 %v1287, 0.0
        %v1290 = vadd.f32 %v1288, 1e-05
        %v1291 = vadd.f32 %v1289, 1e-05
        %v1292 = vrsqrt.pop %v1290
        %v1293 = vmul.f32 %v1292, %v1290
        %v1294 = vmul.f32 %v1293, %v1292
        %v1295 = vmul.f32 0.5, %v1294
        %v1296 = vsub.f32 1.5, %v1295
        %v1297 = vmul.f32 %v1292, %v1296
        %vm1298 = vweird.f32 %v1290
        %vm1299 = vweird.f32 %v1292
        %vm1300 = vmor %vm1298, %vm1299
        %v1301 = vsel %vm1300, %v1292, %v1297
        %v1302 = vrsqrt.pop %v1291
        %v1303 = vmul.f32 %v1302, %v1291
        %v1304 = vmul.f32 %v1303, %v1302
        %v1305 = vmul.f32 0.5, %v1304
        %v1306 = vsub.f32 1.5, %v1305
        %v1307 = vmul.f32 %v1302, %v1306
        %vm1308 = vweird.f32 %v1291
        %vm1309 = vweird.f32 %v1302
        %vm1310 = vmor %vm1308, %vm1309
        %v1311 = vsel %vm1310, %v1302, %v1307
        %1312 = vrot.lane.b32.xlu0 %v845, 127
        %v1313 = vpop.permute.xlu0 %1312
        %1314 = vrot.lane.b32.xlu0 %v846, 127
        %v1315 = vpop.permute.xlu0 %1314
        %v1318 = vmul.f32 %v1301, %v1313
        %v1319 = vmul.f32 %v1311, %v1315
        %1321 = vset.pattern.permute.xlu0 0
        %1322 = vperm.xlu0 %1321, %v1318
        %v1323 = vpop.permute.xlu0 %1322
        %1326 = vset.pattern.permute.xlu0 0
        %1327 = vperm.xlu0 %1326, %v1319
        %v1328 = vpop.permute.xlu0 %1327
        %v1330 = vmul.f32 %v1247, %v1323
        %v1331 = vmul.f32 %v1248, %v1328
        %v1332 = vmul.f32 %v1280, %v1318
        %v1333 = vmul.f32 %v1281, %v1319
        %1336 = vrot.lane.b32.xlu0 %v1332, 2
        %v1337 = vpop.permute.xlu0 %1336
        %1338 = vrot.lane.b32.xlu0 %v1333, 2
        %v1339 = vpop.permute.xlu0 %1338
        %v1342 = vsub.f32 %v845, %v1337
        %v1343 = vsub.f32 %v846, %v1339
        %1345 = vset.pattern.permute.xlu0 2
        %1346 = vperm.xlu0 %1345, %v1342
        %v1347 = vpop.permute.xlu0 %1346
        %1350 = vset.pattern.permute.xlu0 2
        %1351 = vperm.xlu0 %1350, %v1343
        %v1352 = vpop.permute.xlu0 %1351
        %v1354 = vadd.f32 %v1330, %v1347
        %v1355 = vadd.f32 %v1331, %v1352
        %s1356 = scalar_lea.vmem %s3, 32
        %v1357 = vld [vmem:[%s1356] sm:$0xff]
        %v1358 = vld [vmem:[%s1356 + $0x8] sm:$0xff]
        %v1359 = vld [vmem:[%s1356 + $0x10] sm:$0xff]
        %v1360 = vld [vmem:[%s1356 + $0x18] sm:$0xff]
        %v1362 = vsel %vm793, %v1357, 0
        %v1365 = vsel %vm793, %v1358, 0
        %v1368 = vsel %vm793, %v1359, 0
        %v1371 = vsel %vm793, %v1360, 0
        %1373 = vmatpush.msra.mxu0 0.0
        %1374 = vmatpush.msra.mxu0 0.0
        %1375 = vmatpush.msra.mxu0 0.0
        %1376 = vmatpush.msra.mxu0 0.0
        %1377 = vmatpush.msra.mxu0 0.0
        %1378 = vmatpush.msra.mxu0 0.0
        %1379 = vmatpush.msra.mxu0 0.0
        %1380 = vmatpush.msra.mxu0 0.0
        %1381 = vmatpush.msra.mxu0 0.0
        %1382 = vmatpush.msra.mxu0 0.0
        %1383 = vmatpush.msra.mxu0 0.0
        %1384 = vmatpush.msra.mxu0 0.0
        %1385 = vmatpush.msra.mxu0 0.0
        %1386 = vmatpush.msra.mxu0 0.0
        %1387 = vmatpush.msra.mxu0 %v1355
        %1388 = vmatpush.msra.mxu0 %v1354
        %1389 = vmatmul.f32.gmra.mxu0 %v1362
        %v1390 = vpop.f32.mrf.mxu0
        %v1391 = vadd.f32 0.0, %v1390
        %1392 = vmatmul.f32.gmra.mxu0 %v1365
        %v1393 = vpop.f32.mrf.mxu0
        %v1394 = vadd.f32 0.0, %v1393
        %1395 = vmatmul.f32.gmra.mxu0 %v1368
        %v1396 = vpop.f32.mrf.mxu0
        %v1397 = vadd.f32 0.0, %v1396
        %1398 = vmatmul.f32.gmra.mxu0 %v1371
        %v1399 = vpop.f32.mrf.mxu0
        %v1400 = vadd.f32 0.0, %v1399
        %1401 = vdwg.mxu0
        %v1402 = vadd.f32 %v835, %v1391
        %v1403 = vadd.f32 %v836, %v1394
        %v1404 = vadd.f32 %v837, %v1397
        %v1405 = vadd.f32 %v838, %v1400
        %1406 = vst [vmem:[%s261] sm:$0xff] %v1402
        %1407 = vst [vmem:[%s261 + $0x8] sm:$0xff] %v1403
        %1408 = vst [vmem:[%s261 + $0x10] sm:$0xff] %v1404
        %1409 = vst [vmem:[%s261 + $0x18] sm:$0xff] %v1405
        %s1410 = sand.u32 %s160, 1
        %s1411 = scalar_lea.sflag [#allocation4], %s1410
        %s1412 = sand.u32 %s160, 1
        %s1413 = smul.addr %s1412, 32
        %s1414 = scalar_lea.vmem [#allocation5], %s1413
        // Predicated region
        $region49: #{tpu_custom_call.1} parent=43 // pred_check
          %p1415 = pneg %p170
        $region50: #{tpu_custom_call.1} parent=43 // pred_check_branch
          %1417 = sbr.rel (%p1415) target = $region52
        $region51: #{tpu_custom_call.1} parent=43 // pred_region
          %1419 = vsyncadd %s1411, 0
          %s1420 = smul.addr %s21, 4
          %s1421 = smul.addr %s1420, 8
          %s1422 = scalar_lea.hbm %s6, %s1421
          %s1423 = sshll.u32 %s1414, 4
          %s1424 = int_to_ptr.vmem [resolvable:$true] %s1423
          %s1425 = sshll.u32 %s1422, 4
          %s1426 = int_to_ptr.hbm [resolvable:$true] %s1425
          %1431 = dma.vmem_to_hbm [thread:$0]  %s1424, 512, %s1426, %s1411, 128, 128, 8
        $region52: #{tpu_custom_call.1} parent=43 // pred_fallthru
          _
      $region44: #{tpu_custom_call.1} parent=5 // pred_fallthru
        _
      %p1432 = scmp.le.s32.totalorder 2, %s16
      // Predicated region
      $region53: #{tpu_custom_call.1} parent=5 // pred_check
        %p1433 = pneg %p1432
      $region54: #{tpu_custom_call.1} parent=5 // pred_check_branch
        %1435 = sbr.rel (%p1433) target = $region56
      $region55: #{tpu_custom_call.1} parent=5 // pred_region
        %s1436 = ssub.s32 %s16, 2
        // Predicated region
        $region57: #{tpu_custom_call.1} parent=55 // pred_check
          %p1437 = pneg %p176
        $region58: #{tpu_custom_call.1} parent=55 // pred_check_branch
          %1439 = sbr.rel (%p1437) target = $region60
        $region59: #{tpu_custom_call.1} parent=55 // pred_region
          %s1440 = sand.u32 %s161, 1
          %s1441 = scalar_lea.sflag [#allocation4], %s1440
          %s1442 = sand.u32 %s161, 1
          %s1443 = smul.addr %s1442, 32
          %s1444 = scalar_lea.vmem [#allocation5], %s1443
          %1446 = dma.done %s1441, 512
        $region60: #{tpu_custom_call.1} parent=55 // pred_fallthru
          _
      $region56: #{tpu_custom_call.1} parent=5 // pred_fallthru
        _
    $region6: #{tpu_custom_call.1} parent=1 // loop_footer
      %s20 = sadd.s32 1, %s16
    $region7: #{tpu_custom_call.1} parent=1 // loop_footer_branch
      %15 = sbr.rel target = $region3
    $region8: #{tpu_custom_call.1} parent=1 // loop_exit
      _
    %1447 = vsyncpa [#allocation3], 1
    %s1448 = scalar_lea.sflag [#allocation3], 1
    %1449 = vsyncpa %s1448, 1
    %1450 = vsyncpa [#allocation4], 1
    %s1451 = scalar_lea.sflag [#allocation4], 1
    %1452 = vsyncpa %s1451, 1

</llo_original>
